<compile_context>
chip_gen: v7x
topology: tpu7x:2x2x1
jax: 0.10.0
libtpu: 0.0.40
codegen_flags: <defaults>
</compile_context>

<pallas_src>
import functools

import jax
import jax.numpy as jnp
from jax.experimental import pallas as pl
from jax.experimental.pallas import tpu as pltpu

_INV_SQRT2 = 0.7071067811865476  # 1/sqrt(2): exact (erf) GELU == nn.GELU default


def _vmem_limit_bytes():
    cap = 128 * 1024 * 1024
    try:
        cap = int(pltpu.get_tpu_info().vmem_capacity_bytes)
    except Exception:
        pass
    return min(int(cap * 0.75), 100 * 1024 * 1024)


def _pick_tile_m(M, requested):
    if M > requested:
        return requested
    if M <= 8:
        return M
    # Split small M into >=2 blocks so both v7x TensorCores get work
    # (a partial last block is handled by Pallas masking).
    half = (((M + 1) // 2) + 7) // 8 * 8
    return min(half, M)


def _gelu_exact(x):
    return 0.5 * x * (1.0 + jax.lax.erf(x * _INV_SQRT2))


# ----------------------------------------------------------------------------
# Fused MLP kernel (use_dwconv=False): fc1 (+ReLU) -> GELU -> fc2 in one pass,
# keeping the (tile_m, hidden) intermediate on-chip (no HBM round trip).
# ----------------------------------------------------------------------------
def _fused_mlp_kernel(x_ref, w1_ref, b1_ref, w2_ref, b2_ref, o_ref, *,
                      use_relu, matmul_dtype):
    x = x_ref[...]
    w1 = w1_ref[...]
    if matmul_dtype is not None:
        x = x.astype(matmul_dtype)
        w1 = w1.astype(matmul_dtype)
    h = jnp.dot(x, w1, preferred_element_type=jnp.float32) + b1_ref[...].astype(jnp.float32)
    if use_relu:
        h = jnp.maximum(h, 0.0)
    g = _gelu_exact(h)
    w2 = w2_ref[...]
    if matmul_dtype is not None:
        g = g.astype(matmul_dtype)
        w2 = w2.astype(matmul_dtype)
    else:
        g = g.astype(w2.dtype)
    y = jnp.dot(g, w2, preferred_element_type=jnp.float32) + b2_ref[...].astype(jnp.float32)
    o_ref[...] = y.astype(o_ref.dtype)


def fused_mlp_pallas(x2d, w1, b1, w2, b2, *, use_relu, tile_m=512,
                     matmul_dtype=jnp.bfloat16):
    M, K = x2d.shape
    hidden = w1.shape[1]
    N = w2.shape[1]
    tm = _pick_tile_m(M, tile_m)
    # TODO(synk): for very large hidden/out widths add an N-tile grid axis so the weight
    # blocks shrink below v7x's 64 MiB VMEM budget.
    return pl.pallas_call(
        functools.partial(_fused_mlp_kernel, use_relu=use_relu, matmul_dtype=matmul_dtype),
        out_shape=jax.ShapeDtypeStruct((M, N), x2d.dtype),
        grid=(pl.cdiv(M, tm),),
        in_specs=[
            pl.BlockSpec((tm, K), lambda i: (i, 0)),
            pl.BlockSpec((K, hidden), lambda i: (0, 0)),   # invariant weight blocks
            pl.BlockSpec((1, hidden), lambda i: (0, 0)),
            pl.BlockSpec((hidden, N), lambda i: (0, 0)),
            pl.BlockSpec((1, N), lambda i: (0, 0)),
        ],
        out_specs=pl.BlockSpec((tm, N), lambda i: (i, 0)),
        compiler_params=pltpu.CompilerParams(
            dimension_semantics=("parallel",),
            vmem_limit_bytes=_vmem_limit_bytes()),
    )(x2d, w1, b1, w2, b2)


# ----------------------------------------------------------------------------
# Fully fused dwconv path (use_dwconv=True):
#   fc1 (+ReLU) -> depthwise KxK conv -> GELU -> fc2-accumulate
# Grid (B, hidden/tile_c); the channel-tile axis is the "arbitrary" reduction axis of the
# fc2 accumulation, so the hidden activation never leaves VMEM.
# ----------------------------------------------------------------------------
def _fused_dwconv_mlp_kernel(x_ref, w1_ref, b1_ref, wdw_ref, bdw_ref, w2_ref, b2_ref,
                             o_ref, xpad_ref, acc_ref, *,
                             H, W, KH, KW, PH, PW, LPAD, use_relu, matmul_dtype):
    c = pl.program_id(1)
    tc = w1_ref.shape[1]

    @pl.when(c == 0)
    def _():
        # Halo rows/cols of the padded scratch are only ever zero; fill once per image.
        # (The interior is fully overwritten below on every step.)
        xpad_ref[...] = jnp.zeros(xpad_ref.shape, xpad_ref.dtype)
        acc_ref[...] = jnp.zeros(acc_ref.shape, acc_ref.dtype)

    # --- fc1 (+ReLU) for this channel tile: (N, dim) @ (dim, tc) on the MXU ---
    x = x_ref[0]
    w1 = w1_ref[...]
    if matmul_dtype is not None:
        x = x.astype(matmul_dtype)
        w1 = w1.astype(matmul_dtype)
    h = jnp.dot(x, w1, preferred_element_type=jnp.float32) + b1_ref[...].astype(jnp.float32)
    if use_relu:
        h = jnp.maximum(h, 0.0)

    # --- depthwise KxK conv (stride 1, 'same' pad, bias) via the zero-halo scratch ---
    xpad_ref[PH:PH + H, LPAD:LPAD + W, :] = h.reshape(H, W, tc)
    conv = jnp.zeros((H, W, tc), jnp.float32)
    col0 = LPAD - PW
    for kw in range(KW):                                 # only KW column-shifted reads
        slab = xpad_ref[:, col0 + kw:col0 + kw + W, :]   # (H + KH - 1, W, tc)
        for kh in range(KH):                             # cheap leading-dim row slices
            conv = conv + slab[kh:kh + H] * wdw_ref[kh * KW + kw, :].astype(jnp.float32)
    conv = conv + bdw_ref[0, :].astype(jnp.float32)

    # --- GELU -> partial fc2, accumulated over channel tiles ---
    g = _gelu_exact(conv).reshape(H * W, tc)
    w2 = w2_ref[...]
    if matmul_dtype is not None:
        g = g.astype(matmul_dtype)
        w2 = w2.astype(matmul_dtype)
    else:
        g = g.astype(w2.dtype)
    acc_ref[...] += jnp.dot(g, w2, preferred_element_type=jnp.float32)

    @pl.when(c == pl.num_programs(1) - 1)
    def _():
        out = acc_ref[...] + b2_ref[...].astype(jnp.float32)
        o_ref[...] = out[None].astype(o_ref.dtype)


def fused_dwconv_mlp_pallas(x, w1, b1, w_dw, b_dw, w2, b2, *, H, W,
                            kernel_size, padding, use_relu,
                            tile_c=None, matmul_dtype=jnp.bfloat16):
    B, N, dim = x.shape
    assert N == H * W
    hidden = w1.shape[1]
    out_dim = w2.shape[1]
    KH = KW = kernel_size
    # TODO(synk): only stride 1 / 'same' depthwise convs (kernel = 2*padding + 1) supported.
    assert kernel_size == 2 * padding + 1, "dwconv kernel assumes 'same' spatial output"

    if tile_c is None:
        tile_c = next((t for t in (256, 128) if hidden % t == 0), hidden)
    n_ct = hidden // tile_c

    LPAD = ((max(padding, 1) + 7) // 8) * 8          # 8-aligned left pad -> aligned interior store
    pad_rows = H + KH - 1
    pad_cols = LPAD + W + (KW - 1 - padding)

    kern = functools.partial(_fused_dwconv_mlp_kernel, H=H, W=W, KH=KH, KW=KW,
                             PH=padding, PW=padding, LPAD=LPAD,
                             use_relu=use_relu, matmul_dtype=matmul_dtype)
    return pl.pallas_call(
        kern,
        out_shape=jax.ShapeDtypeStruct((B, N, out_dim), x.dtype),
        grid=(B, n_ct),
        in_specs=[
            pl.BlockSpec((1, N, dim), lambda b, c: (b, 0, 0)),       # fetched once per image
            pl.BlockSpec((dim, tile_c), lambda b, c: (0, c)),
            pl.BlockSpec((1, tile_c), lambda b, c: (0, c)),
            pl.BlockSpec((KH * KW, tile_c), lambda b, c: (0, c)),
            pl.BlockSpec((1, tile_c), lambda b, c: (0, c)),
            pl.BlockSpec((tile_c, out_dim), lambda b, c: (c, 0)),
            pl.BlockSpec((1, out_dim), lambda b, c: (0, 0)),
        ],
        out_specs=pl.BlockSpec((1, N, out_dim), lambda b, c: (b, 0, 0)),
        scratch_shapes=[
            pltpu.VMEM((pad_rows, pad_cols, tile_c), jnp.float32),   # padded image scratch
            pltpu.VMEM((N, out_dim), jnp.float32),                   # fc2 accumulator
        ],
        compiler_params=pltpu.CompilerParams(
            dimension_semantics=("parallel", "arbitrary"),
            vmem_limit_bytes=_vmem_limit_bytes()),
    )(x, w1, b1, w_dw, b_dw, w2, b2)


# ----------------------------------------------------------------------------
# Full module forward
# ----------------------------------------------------------------------------
def pvt_feedforward(x, params, *, H, W, linear=False, use_dwconv=False,
                    kernel_size_dwconv=3, stride_dwconv=1, padding_dwconv=1,
                    tile_m=512, tile_c=None, matmul_dtype=jnp.bfloat16):
    """x: (B, N, dim) with N == H*W. Returns (B, N, out_dim).

    Dropout p=0.0 is identity.  # TODO(synk): dropout with p > 0.0 not implemented.
    """
    B, N, dim = x.shape
    assert N == H * W
    out_dim = params["w2"].shape[1]

    if not use_dwconv:
        x2d = x.reshape(B * N, dim)
        out = fused_mlp_pallas(x2d, params["w1"], params["b1"], params["w2"], params["b2"],
                               use_relu=linear, tile_m=tile_m, matmul_dtype=matmul_dtype)
        return out.reshape(B, N, out_dim)

    # TODO(synk): stride_dwconv != 1 not implemented (PVT uses stride 1).
    assert stride_dwconv == 1
    return fused_dwconv_mlp_pallas(
        x, params["w1"], params["b1"], params["w_dw"], params["b_dw"],
        params["w2"], params["b2"], H=H, W=W,
        kernel_size=kernel_size_dwconv, padding=padding_dwconv,
        use_relu=linear, tile_c=tile_c, matmul_dtype=matmul_dtype)


# ----------------------------------------------------------------------------
# Pure-JAX reference (for correctness) and params
# ----------------------------------------------------------------------------
def pvt_feedforward_ref(x, params, *, H, W, linear, use_dwconv,
                        kernel_size=3, padding=1):
    B, N, dim = x.shape
    hp = jax.lax.Precision.HIGHEST
    h = jnp.einsum("bnd,dh->bnh", x, params["w1"], precision=hp) + params["b1"][0]
    if linear:
        h = jnp.maximum(h, 0.0)
    if use_dwconv:
        C = h.shape[-1]
        img = h.reshape(B, H, W, C)
        filt = params["w_dw"].reshape(kernel_size, kernel_size, 1, C)
        img = jax.lax.conv_general_dilated(
            img, filt, window_strides=(1, 1),
            padding=[(padding, padding), (padding, padding)],
            dimension_numbers=("NHWC", "HWIO", "NHWC"),
            feature_group_count=C, precision=hp)
        h = (img + params["b_dw"][0]).reshape(B, N, C)
    g = 0.5 * h * (1.0 + jax.lax.erf(h * _INV_SQRT2))
    return jnp.einsum("bnh,ho->bno", g, params["w2"], precision=hp) + params["b2"][0]


def init_params(key, dim, hidden_dim, out_dim, kernel_size=3, scale=0.1):
    ks = jax.random.split(key, 6)
    return {
        "w1": scale * jax.random.normal(ks[0], (dim, hidden_dim), jnp.float32),
        "b1": scale * jax.random.normal(ks[1], (1, hidden_dim), jnp.float32),
        # depthwise conv weight stored as (KH*KW, C)  (PyTorch layout: (C, 1, KH, KW))
        "w_dw": scale * jax.random.normal(ks[2], (kernel_size * kernel_size, hidden_dim), jnp.float32),
        "b_dw": scale * jax.random.normal(ks[3], (1, hidden_dim), jnp.float32),
        "w2": scale * jax.random.normal(ks[4], (hidden_dim, out_dim), jnp.float32),
        "b2": scale * jax.random.normal(ks[5], (1, out_dim), jnp.float32),
    }


def _check(got, ref, name):
    err = float(jnp.max(jnp.abs(got - ref)))
    scale = float(jnp.max(jnp.abs(ref))) + 1e-6
    # bf16 MXU operands (f32 accumulation) are the default -> allow 2% of ref scale.
    assert err <= 0.02 * scale + 1e-3, f"{name}: max|diff|={err:.3e} (ref scale {scale:.3e})"


if __name__ == "__main__":
    # Small deterministic example: B=2, H=W=8 -> N=64, dim=64, hidden=512, out=64
    B, H, W = 2, 8, 8
    N = H * W
    dim, hidden_dim, out_dim = 64, 512, 64

    key = jax.random.PRNGKey(0)
    kx, kp = jax.random.split(key)
    x = jax.random.normal(kx, (B, N, dim), jnp.float32)
    params = init_params(kp, dim, hidden_dim, out_dim, kernel_size=3)

    # Path 1: linear=True, use_dwconv=True  -> single fused fc1+ReLU->dwconv->GELU->fc2 kernel
    out_dw = pvt_feedforward(x, params, H=H, W=W, linear=True, use_dwconv=True,
                             kernel_size_dwconv=3, padding_dwconv=1)
    out_dw = jax.block_until_ready(out_dw)
    assert out_dw.shape == (B, N, out_dim), out_dw.shape
    ref_dw = pvt_feedforward_ref(x, params, H=H, W=W, linear=True, use_dwconv=True)
    _check(out_dw, ref_dw, "fused dwconv path")

    # Path 2: linear=False, use_dwconv=False -> single fused fc1->GELU->fc2 kernel
    out_mlp = pvt_feedforward(x, params, H=H, W=W, linear=False, use_dwconv=False)
    out_mlp = jax.block_until_ready(out_mlp)
    assert out_mlp.shape == (B, N, out_dim), out_mlp.shape
    ref_mlp = pvt_feedforward_ref(x, params, H=H, W=W, linear=False, use_dwconv=False)
    _check(out_mlp, ref_mlp, "fused mlp path")

    print("KERNEL_OK")
</pallas_src>

<mosaic_0001>
module attributes {stable_mosaic.version = 11 : i64} {
  func.func @_fused_dwconv_mlp_kernel(%arg0: i32, %arg1: i32, %arg2: memref<1x64x64xf32, #tpu.memory_space<vmem>>, %arg3: memref<64x256xf32, #tpu.memory_space<vmem>>, %arg4: memref<1x256xf32, #tpu.memory_space<vmem>>, %arg5: memref<9x256xf32, #tpu.memory_space<vmem>>, %arg6: memref<1x256xf32, #tpu.memory_space<vmem>>, %arg7: memref<256x64xf32, #tpu.memory_space<vmem>>, %arg8: memref<1x64xf32, #tpu.memory_space<vmem>>, %arg9: memref<1x64x64xf32, #tpu.memory_space<vmem>>, %arg10: memref<10x17x256xf32, #tpu.memory_space<vmem>>, %arg11: memref<64x64xf32, #tpu.memory_space<vmem>>) attributes {dimension_semantics = [#tpu.dimension_semantics<parallel>, #tpu.dimension_semantics<arbitrary>], iteration_bounds = array<i64: 2, 2>, scalar_prefetch = 0 : i64, scratch_operands = 2 : i64, tpu.core_type = #tpu.core_type<tc>, window_params = [{transform_indices = @transform_0, window_bounds = array<i64: 1, 64, 64>}, {transform_indices = @transform_1, window_bounds = array<i64: 64, 256>}, {transform_indices = @transform_2, window_bounds = array<i64: 1, 256>}, {transform_indices = @transform_3, window_bounds = array<i64: 9, 256>}, {transform_indices = @transform_4, window_bounds = array<i64: 1, 256>}, {transform_indices = @transform_5, window_bounds = array<i64: 256, 64>}, {pipeline_mode = #tpu.pipeline_mode<synchronous>, transform_indices = @transform_6, window_bounds = array<i64: 1, 64>}, {transform_indices = @transform_7, window_bounds = array<i64: 1, 64, 64>}]} {
    %c0_i32 = arith.constant 0 : i32
    %0 = arith.cmpi eq, %arg1, %c0_i32 : i32
    %1 = arith.extui %0 : i1 to i32
    %c0_i32_0 = arith.constant 0 : i32
    %2 = arith.cmpi ne, %1, %c0_i32_0 : i32
    scf.if %2 {
      %cst_43 = arith.constant 0.000000e+00 : f32
      %107 = vector.broadcast %cst_43 : f32 to vector<10x17x256xf32>
      %c0_44 = arith.constant 0 : index
      %c0_45 = arith.constant 0 : index
      %c0_46 = arith.constant 0 : index
      %108 = vector.load %arg10[%c0_44, %c0_45, %c0_46] : memref<10x17x256xf32, #tpu.memory_space<vmem>>, vector<10x17x256xf32>
      tpu.vector_store %arg10[%c0_44, %c0_45, %c0_46], %107 {strides = array<i32>} : memref<10x17x256xf32, #tpu.memory_space<vmem>>, vector<10x17x256xf32>,
      %cst_47 = arith.constant 0.000000e+00 : f32
      %109 = vector.broadcast %cst_47 : f32 to vector<64x64xf32>
      %c0_48 = arith.constant 0 : index
      %c0_49 = arith.constant 0 : index
      %110 = vector.load %arg11[%c0_48, %c0_49] : memref<64x64xf32, #tpu.memory_space<vmem>>, vector<64x64xf32>
      tpu.vector_store %arg11[%c0_48, %c0_49], %109 {strides = array<i32>} : memref<64x64xf32, #tpu.memory_space<vmem>>, vector<64x64xf32>,
    } else {
    }
    %c0 = arith.constant 0 : index
    %c0_1 = arith.constant 0 : index
    %c0_2 = arith.constant 0 : index
    %3 = vector.load %arg2[%c0, %c0_1, %c0_2] : memref<1x64x64xf32, #tpu.memory_space<vmem>>, vector<1x64x64xf32>
    %4 = vector.shape_cast %3 : vector<1x64x64xf32> to vector<64x64xf32>
    %c0_3 = arith.constant 0 : index
    %c0_4 = arith.constant 0 : index
    %5 = vector.load %arg3[%c0_3, %c0_4] : memref<64x256xf32, #tpu.memory_space<vmem>>, vector<64x256xf32>
    %6 = arith.truncf %4 : vector<64x64xf32> to vector<64x64xbf16>
    %7 = arith.truncf %5 : vector<64x256xf32> to vector<64x256xbf16>
    %cst = arith.constant dense<0.000000e+00> : vector<64x256xf32>
    %8 = tpu.matmul %6, %7, %cst {dimension_numbers = #tpu.dot_dimension_numbers<[1], [0], [0], [1], [0, 0, 1, 1], [], []>} : vector<64x64xbf16>, vector<64x256xbf16>, vector<64x256xf32> -> vector<64x256xf32>
    %c0_5 = arith.constant 0 : index
    %c0_6 = arith.constant 0 : index
    %9 = vector.load %arg4[%c0_5, %c0_6] : memref<1x256xf32, #tpu.memory_space<vmem>>, vector<1x256xf32>
    %10 = vector.broadcast %9 : vector<1x256xf32> to vector<64x256xf32>
    %11 = arith.addf %8, %10 : vector<64x256xf32>
    %cst_7 = arith.constant 0.000000e+00 : f32
    %12 = vector.broadcast %cst_7 : f32 to vector<64x256xf32>
    %13 = arith.maximumf %11, %12 : vector<64x256xf32>
    %14 = vector.shape_cast %13 : vector<64x256xf32> to vector<8x8x256xf32>
    %c1 = arith.constant 1 : index
    %c8 = arith.constant 8 : index
    %c0_8 = arith.constant 0 : index
    %15 = vector.load %arg10[%c1, %c8, %c0_8] : memref<10x17x256xf32, #tpu.memory_space<vmem>>, vector<8x8x256xf32>
    tpu.vector_store %arg10[%c1, %c8, %c0_8], %14 {strides = array<i32>} : memref<10x17x256xf32, #tpu.memory_space<vmem>>, vector<8x8x256xf32>,
    %cst_9 = arith.constant 0.000000e+00 : f32
    %16 = vector.broadcast %cst_9 : f32 to vector<8x8x256xf32>
    %c0_10 = arith.constant 0 : index
    %c7 = arith.constant 7 : index
    %c0_11 = arith.constant 0 : index
    %17 = vector.load %arg10[%c0_10, %c7, %c0_11] : memref<10x17x256xf32, #tpu.memory_space<vmem>>, vector<10x8x256xf32>
    %18 = vector.extract_strided_slice %17 {offsets = [0, 0, 0], sizes = [8, 8, 256], strides = [1, 1, 1]} : vector<10x8x256xf32> to vector<8x8x256xf32>
    %c0_12 = arith.constant 0 : index
    %c0_13 = arith.constant 0 : index
    %19 = vector.load %arg5[%c0_12, %c0_13] : memref<9x256xf32, #tpu.memory_space<vmem>>, vector<1x256xf32>
    %20 = vector.shape_cast %19 : vector<1x256xf32> to vector<256xf32>
    %21 = vector.shape_cast %20 : vector<256xf32> to vector<1x1x256xf32>
    %22 = vector.broadcast %21 : vector<1x1x256xf32> to vector<8x8x256xf32>
    %23 = arith.mulf %18, %22 : vector<8x8x256xf32>
    %24 = arith.addf %16, %23 : vector<8x8x256xf32>
    %25 = vector.extract_strided_slice %17 {offsets = [1, 0, 0], sizes = [8, 8, 256], strides = [1, 1, 1]} : vector<10x8x256xf32> to vector<8x8x256xf32>
    %c3 = arith.constant 3 : index
    %c0_14 = arith.constant 0 : index
    %26 = vector.load %arg5[%c3, %c0_14] : memref<9x256xf32, #tpu.memory_space<vmem>>, vector<1x256xf32>
    %27 = vector.shape_cast %26 : vector<1x256xf32> to vector<256xf32>
    %28 = vector.shape_cast %27 : vector<256xf32> to vector<1x1x256xf32>
    %29 = vector.broadcast %28 : vector<1x1x256xf32> to vector<8x8x256xf32>
    %30 = arith.mulf %25, %29 : vector<8x8x256xf32>
    %31 = arith.addf %24, %30 : vector<8x8x256xf32>
    %32 = vector.extract_strided_slice %17 {offsets = [2, 0, 0], sizes = [8, 8, 256], strides = [1, 1, 1]} : vector<10x8x256xf32> to vector<8x8x256xf32>
    %c6 = arith.constant 6 : index
    %c0_15 = arith.constant 0 : index
    %33 = vector.load %arg5[%c6, %c0_15] : memref<9x256xf32, #tpu.memory_space<vmem>>, vector<1x256xf32>
    %34 = vector.shape_cast %33 : vector<1x256xf32> to vector<256xf32>
    %35 = vector.shape_cast %34 : vector<256xf32> to vector<1x1x256xf32>
    %36 = vector.broadcast %35 : vector<1x1x256xf32> to vector<8x8x256xf32>
    %37 = arith.mulf %32, %36 : vector<8x8x256xf32>
    %38 = arith.addf %31, %37 : vector<8x8x256xf32>
    %c0_16 = arith.constant 0 : index
    %c8_17 = arith.constant 8 : index
    %c0_18 = arith.constant 0 : index
    %39 = vector.load %arg10[%c0_16, %c8_17, %c0_18] : memref<10x17x256xf32, #tpu.memory_space<vmem>>, vector<10x8x256xf32>
    %40 = vector.extract_strided_slice %39 {offsets = [0, 0, 0], sizes = [8, 8, 256], strides = [1, 1, 1]} : vector<10x8x256xf32> to vector<8x8x256xf32>
    %c1_19 = arith.constant 1 : index
    %c0_20 = arith.constant 0 : index
    %41 = vector.load %arg5[%c1_19, %c0_20] : memref<9x256xf32, #tpu.memory_space<vmem>>, vector<1x256xf32>
    %42 = vector.shape_cast %41 : vector<1x256xf32> to vector<256xf32>
    %43 = vector.shape_cast %42 : vector<256xf32> to vector<1x1x256xf32>
    %44 = vector.broadcast %43 : vector<1x1x256xf32> to vector<8x8x256xf32>
    %45 = arith.mulf %40, %44 : vector<8x8x256xf32>
    %46 = arith.addf %38, %45 : vector<8x8x256xf32>
    %47 = vector.extract_strided_slice %39 {offsets = [1, 0, 0], sizes = [8, 8, 256], strides = [1, 1, 1]} : vector<10x8x256xf32> to vector<8x8x256xf32>
    %c4 = arith.constant 4 : index
    %c0_21 = arith.constant 0 : index
    %48 = vector.load %arg5[%c4, %c0_21] : memref<9x256xf32, #tpu.memory_space<vmem>>, vector<1x256xf32>
    %49 = vector.shape_cast %48 : vector<1x256xf32> to vector<256xf32>
    %50 = vector.shape_cast %49 : vector<256xf32> to vector<1x1x256xf32>
    %51 = vector.broadcast %50 : vector<1x1x256xf32> to vector<8x8x256xf32>
    %52 = arith.mulf %47, %51 : vector<8x8x256xf32>
    %53 = arith.addf %46, %52 : vector<8x8x256xf32>
    %54 = vector.extract_strided_slice %39 {offsets = [2, 0, 0], sizes = [8, 8, 256], strides = [1, 1, 1]} : vector<10x8x256xf32> to vector<8x8x256xf32>
    %c7_22 = arith.constant 7 : index
    %c0_23 = arith.constant 0 : index
    %55 = vector.load %arg5[%c7_22, %c0_23] : memref<9x256xf32, #tpu.memory_space<vmem>>, vector<1x256xf32>
    %56 = vector.shape_cast %55 : vector<1x256xf32> to vector<256xf32>
    %57 = vector.shape_cast %56 : vector<256xf32> to vector<1x1x256xf32>
    %58 = vector.broadcast %57 : vector<1x1x256xf32> to vector<8x8x256xf32>
    %59 = arith.mulf %54, %58 : vector<8x8x256xf32>
    %60 = arith.addf %53, %59 : vector<8x8x256xf32>
    %c0_24 = arith.constant 0 : index
    %c9 = arith.constant 9 : index
    %c0_25 = arith.constant 0 : index
    %61 = vector.load %arg10[%c0_24, %c9, %c0_25] : memref<10x17x256xf32, #tpu.memory_space<vmem>>, vector<10x8x256xf32>
    %62 = vector.extract_strided_slice %61 {offsets = [0, 0, 0], sizes = [8, 8, 256], strides = [1, 1, 1]} : vector<10x8x256xf32> to vector<8x8x256xf32>
    %c2 = arith.constant 2 : index
    %c0_26 = arith.constant 0 : index
    %63 = vector.load %arg5[%c2, %c0_26] : memref<9x256xf32, #tpu.memory_space<vmem>>, vector<1x256xf32>
    %64 = vector.shape_cast %63 : vector<1x256xf32> to vector<256xf32>
    %65 = vector.shape_cast %64 : vector<256xf32> to vector<1x1x256xf32>
    %66 = vector.broadcast %65 : vector<1x1x256xf32> to vector<8x8x256xf32>
    %67 = arith.mulf %62, %66 : vector<8x8x256xf32>
    %68 = arith.addf %60, %67 : vector<8x8x256xf32>
    %69 = vector.extract_strided_slice %61 {offsets = [1, 0, 0], sizes = [8, 8, 256], strides = [1, 1, 1]} : vector<10x8x256xf32> to vector<8x8x256xf32>
    %c5 = arith.constant 5 : index
    %c0_27 = arith.constant 0 : index
    %70 = vector.load %arg5[%c5, %c0_27] : memref<9x256xf32, #tpu.memory_space<vmem>>, vector<1x256xf32>
    %71 = vector.shape_cast %70 : vector<1x256xf32> to vector<256xf32>
    %72 = vector.shape_cast %71 : vector<256xf32> to vector<1x1x256xf32>
    %73 = vector.broadcast %72 : vector<1x1x256xf32> to vector<8x8x256xf32>
    %74 = arith.mulf %69, %73 : vector<8x8x256xf32>
    %75 = arith.addf %68, %74 : vector<8x8x256xf32>
    %76 = vector.extract_strided_slice %61 {offsets = [2, 0, 0], sizes = [8, 8, 256], strides = [1, 1, 1]} : vector<10x8x256xf32> to vector<8x8x256xf32>
    %c8_28 = arith.constant 8 : index
    %c0_29 = arith.constant 0 : index
    %77 = vector.load %arg5[%c8_28, %c0_29] : memref<9x256xf32, #tpu.memory_space<vmem>>, vector<1x256xf32>
    %78 = vector.shape_cast %77 : vector<1x256xf32> to vector<256xf32>
    %79 = vector.shape_cast %78 : vector<256xf32> to vector<1x1x256xf32>
    %80 = vector.broadcast %79 : vector<1x1x256xf32> to vector<8x8x256xf32>
    %81 = arith.mulf %76, %80 : vector<8x8x256xf32>
    %82 = arith.addf %75, %81 : vector<8x8x256xf32>
    %c0_30 = arith.constant 0 : index
    %c0_31 = arith.constant 0 : index
    %83 = vector.load %arg6[%c0_30, %c0_31] : memref<1x256xf32, #tpu.memory_space<vmem>>, vector<1x256xf32>
    %84 = vector.shape_cast %83 : vector<1x256xf32> to vector<256xf32>
    %85 = vector.shape_cast %84 : vector<256xf32> to vector<1x1x256xf32>
    %86 = vector.broadcast %85 : vector<1x1x256xf32> to vector<8x8x256xf32>
    %87 = arith.addf %82, %86 : vector<8x8x256xf32>
    %cst_32 = arith.constant 5.000000e-01 : f32
    %88 = vector.broadcast %cst_32 : f32 to vector<8x8x256xf32>
    %89 = arith.mulf %88, %87 : vector<8x8x256xf32>
    %cst_33 = arith.constant 0.707106769 : f32
    %90 = vector.broadcast %cst_33 : f32 to vector<8x8x256xf32>
    %91 = arith.mulf %87, %90 : vector<8x8x256xf32>
    %92 = math.erf %91 : vector<8x8x256xf32>
    %cst_34 = arith.constant 1.000000e+00 : f32
    %93 = vector.broadcast %cst_34 : f32 to vector<8x8x256xf32>
    %94 = arith.addf %93, %92 : vector<8x8x256xf32>
    %95 = arith.mulf %89, %94 : vector<8x8x256xf32>
    %96 = vector.shape_cast %95 : vector<8x8x256xf32> to vector<64x256xf32>
    %c0_35 = arith.constant 0 : index
    %c0_36 = arith.constant 0 : index
    %97 = vector.load %arg7[%c0_35, %c0_36] : memref<256x64xf32, #tpu.memory_space<vmem>>, vector<256x64xf32>
    %98 = arith.truncf %96 : vector<64x256xf32> to vector<64x256xbf16>
    %99 = arith.truncf %97 : vector<256x64xf32> to vector<256x64xbf16>
    %c0_37 = arith.constant 0 : index
    %c0_38 = arith.constant 0 : index
    %100 = vector.load %arg11[%c0_37, %c0_38] : memref<64x64xf32, #tpu.memory_space<vmem>>, vector<64x64xf32>
    %cst_39 = arith.constant dense<0.000000e+00> : vector<64x64xf32>
    %101 = tpu.matmul %98, %99, %cst_39 {dimension_numbers = #tpu.dot_dimension_numbers<[1], [0], [0], [1], [0, 0, 1, 1], [], []>} : vector<64x256xbf16>, vector<256x64xbf16>, vector<64x64xf32> -> vector<64x64xf32>
    %102 = arith.addf %100, %101 : vector<64x64xf32>
    %c0_40 = arith.constant 0 : index
    %c0_41 = arith.constant 0 : index
    %103 = vector.load %arg11[%c0_40, %c0_41] : memref<64x64xf32, #tpu.memory_space<vmem>>, vector<64x64xf32>
    tpu.vector_store %arg11[%c0_40, %c0_41], %102 {strides = array<i32>} : memref<64x64xf32, #tpu.memory_space<vmem>>, vector<64x64xf32>,
    %c1_i32 = arith.constant 1 : i32
    %104 = arith.cmpi eq, %arg1, %c1_i32 : i32
    %105 = arith.extui %104 : i1 to i32
    %c0_i32_42 = arith.constant 0 : i32
    %106 = arith.cmpi ne, %105, %c0_i32_42 : i32
    scf.if %106 {
      %c0_43 = arith.constant 0 : index
      %c0_44 = arith.constant 0 : index
      %107 = vector.load %arg11[%c0_43, %c0_44] : memref<64x64xf32, #tpu.memory_space<vmem>>, vector<64x64xf32>
      %c0_45 = arith.constant 0 : index
      %c0_46 = arith.constant 0 : index
      %108 = vector.load %arg8[%c0_45, %c0_46] : memref<1x64xf32, #tpu.memory_space<vmem>>, vector<1x64xf32>
      %109 = vector.broadcast %108 : vector<1x64xf32> to vector<64x64xf32>
      %110 = arith.addf %107, %109 : vector<64x64xf32>
      %111 = vector.shape_cast %110 : vector<64x64xf32> to vector<1x64x64xf32>
      %c0_47 = arith.constant 0 : index
      %c0_48 = arith.constant 0 : index
      %c0_49 = arith.constant 0 : index
      %112 = vector.load %arg9[%c0_47, %c0_48, %c0_49] : memref<1x64x64xf32, #tpu.memory_space<vmem>>, vector<1x64x64xf32>
      tpu.vector_store %arg9[%c0_47, %c0_48, %c0_49], %111 {strides = array<i32>} : memref<1x64x64xf32, #tpu.memory_space<vmem>>, vector<1x64x64xf32>,
    } else {
    }
    return
  }
  func.func @transform_0(%arg0: i32, %arg1: i32) -> (i32, i32, i32) {
    %c0_i32 = arith.constant 0 : i32
    %c0_i32_0 = arith.constant 0 : i32
    %c0_i32_1 = arith.constant 0 : i32
    return %arg0, %c0_i32, %c0_i32_0 : i32, i32, i32
  }
  func.func @transform_1(%arg0: i32, %arg1: i32) -> (i32, i32) {
    %c0_i32 = arith.constant 0 : i32
    %c0_i32_0 = arith.constant 0 : i32
    return %c0_i32, %arg1 : i32, i32
  }
  func.func @transform_2(%arg0: i32, %arg1: i32) -> (i32, i32) {
    %c0_i32 = arith.constant 0 : i32
    %c0_i32_0 = arith.constant 0 : i32
    return %c0_i32, %arg1 : i32, i32
  }
  func.func @transform_3(%arg0: i32, %arg1: i32) -> (i32, i32) {
    %c0_i32 = arith.constant 0 : i32
    %c0_i32_0 = arith.constant 0 : i32
    return %c0_i32, %arg1 : i32, i32
  }
  func.func @transform_4(%arg0: i32, %arg1: i32) -> (i32, i32) {
    %c0_i32 = arith.constant 0 : i32
    %c0_i32_0 = arith.constant 0 : i32
    return %c0_i32, %arg1 : i32, i32
  }
  func.func @transform_5(%arg0: i32, %arg1: i32) -> (i32, i32) {
    %c0_i32 = arith.constant 0 : i32
    %c0_i32_0 = arith.constant 0 : i32
    return %arg1, %c0_i32 : i32, i32
  }
  func.func @transform_6(%arg0: i32, %arg1: i32) -> (i32, i32) {
    %c0_i32 = arith.constant 0 : i32
    %c0_i32_0 = arith.constant 0 : i32
    %c0_i32_1 = arith.constant 0 : i32
    return %c0_i32, %c0_i32_0 : i32, i32
  }
  func.func @transform_7(%arg0: i32, %arg1: i32) -> (i32, i32, i32) {
    %c0_i32 = arith.constant 0 : i32
    %c0_i32_0 = arith.constant 0 : i32
    %c0_i32_1 = arith.constant 0 : i32
    return %arg0, %c0_i32, %c0_i32_0 : i32, i32, i32
  }
}

</mosaic_0001>

<llo_original>
// kernel: tpu_custom_call.1
$region0: #{tpu_custom_call.1}
  #allocation0 [shape = 'u32[]', space=smem, size = 0x4, offset = 0x4, fixed_abs, tag = 'smem constant byte address 0x4 - core index']
  #allocation1 [shape = 'u32[144,128]{1,0:T(1,128)}', space=vmem, size = 0x12000, scoped, tag = 'internal scratch']
  #allocation2 [shape = 'f32[10,17,256]{2,1,0:T(8,128)}', space=vmem, size = 0x3c000, scoped, tag = 'scratch operand']
  #allocation3 [shape = 'f32[64,64]{1,0:T(8,128)}', space=vmem, size = 0x8000, scoped, tag = 'scratch operand']
  %s0 = inlined_call_operand.hbm [shape: f32[2,64,64], index: 0, kind: input, shape index: {}]
  %s1 = inlined_call_operand.hbm [shape: f32[64,512], index: 1, kind: input, shape index: {}]
  %s2 = inlined_call_operand.hbm [shape: f32[1,512], index: 2, kind: input, shape index: {}]
  %s3 = inlined_call_operand.hbm [shape: f32[9,512], index: 3, kind: input, shape index: {}]
  %s4 = inlined_call_operand.hbm [shape: f32[1,512], index: 4, kind: input, shape index: {}]
  %s5 = inlined_call_operand.hbm [shape: f32[512,64], index: 5, kind: input, shape index: {}]
  %s6 = inlined_call_operand.hbm [shape: f32[1,64], index: 6, kind: input, shape index: {}]
  %s7 = inlined_call_operand.hbm [shape: f32[2,64,64], index: 7, kind: output, shape index: {}]
  %s8 = sld [smem:[#allocation0]]
  $region97: #{tpu_custom_call.1} parent=0
    _
  %s10 = ssub.s32 1, %s8
  %s11 = scalar_select 0, %s10, %s8
  $region1: #{tpu_custom_call.1} parent=0
    #allocation4 [shape = 'u8[65536]{0}', space=vmem, size = 0x10000, scoped, tag = 'input window, operand 0']
    #allocation5 [shape = 's32[2]{0}', space=sflag, size = 0x8, scoped, tag = 'scoped memory for tpu_custom_call.1']
    #allocation6 [shape = 's32[2]{0}', space=sflag, size = 0x8, scoped, tag = 'scoped memory for tpu_custom_call.1']
    #allocation7 [shape = 'u8[131072]{0}', space=vmem, size = 0x20000, scoped, tag = 'input window, operand 1']
    #allocation8 [shape = 's32[2]{0}', space=sflag, size = 0x8, scoped, tag = 'scoped memory for tpu_custom_call.1']
    #allocation9 [shape = 'u8[2048]{0}', space=vmem, size = 0x800, scoped, tag = 'input window, operand 2']
    #allocation10 [shape = 'u8[32768]{0}', space=vmem, size = 0x8000, scoped, tag = 'input window, operand 3']
    #allocation11 [shape = 's32[2]{0}', space=sflag, size = 0x8, scoped, tag = 'scoped memory for tpu_custom_call.1']
    #allocation12 [shape = 'u8[2048]{0}', space=vmem, size = 0x800, scoped, tag = 'input window, operand 4']
    #allocation13 [shape = 'u8[262144]{0}', space=vmem, size = 0x40000, scoped, tag = 'input window, operand 5']
    #allocation14 [shape = 's32[2]{0}', space=sflag, size = 0x8, scoped, tag = 'scoped memory for tpu_custom_call.1']
    #allocation15 [shape = 'u8[512]{0}', space=vmem, size = 0x400, scoped, tag = 'input window, operand 6, single buffered']
    #allocation16 [shape = 'u8[65536]{0}', space=vmem, size = 0x10000, scoped, tag = 'output window, operand 0']
    %12 = vsyncpa [#allocation5], 0
    %s13 = scalar_lea.sflag [#allocation5], 1
    %14 = vsyncpa %s13, 0
    %15 = vsyncpa [#allocation8], 0
    %s16 = scalar_lea.sflag [#allocation8], 1
    %17 = vsyncpa %s16, 0
    %18 = vsyncpa [#allocation11], 0
    %s19 = scalar_lea.sflag [#allocation11], 1
    %20 = vsyncpa %s19, 0
    %21 = vsyncpa [#allocation14], 0
    %s22 = scalar_lea.sflag [#allocation14], 1
    %23 = vsyncpa %s22, 0
    %24 = vsyncpa [#allocation6], 0
    %s25 = scalar_lea.sflag [#allocation6], 1
    %26 = vsyncpa %s25, 0
    loop: start=0, step=1, limit=6
    $region2: #{tpu_custom_call.1} parent=1 // loop_pre_header
      _
    $region3: #{tpu_custom_call.1} parent=1 // loop_header
      %s28 = sphi 0, %s32
      %p29 = scmp.ge.s32.totalorder %s28, 6
      %s35 = sphi 0, %s47
      %s36 = sphi 0, %s43
      %s37 = sphi 0, %s35
      %s38 = sphi 0, %s36
      %s39 = sphi 0, %s37
      %s40 = sphi 0, %s38
      %s50 = sphi 0, %s52
      %s53 = sphi 0, %s50
      %s54 = sphi 0, %s53
      %s70 = sphi 0, %s54
      %s76 = sphi 0, %s78
      %s79 = sphi 0, %s76
      %s80 = sphi 0, %s79
      %s96 = sphi 0, %s80
      %s102 = sphi 0, %s104
      %s105 = sphi 0, %s102
      %s106 = sphi 0, %s105
      %s122 = sphi 0, %s106
      %s128 = sphi 0, %s130
      %s131 = sphi 0, %s128
      %s132 = sphi 0, %s131
      %s148 = sphi 0, %s132
      %s154 = sphi 0, %s156
      %s157 = sphi 0, %s154
      %s158 = sphi 0, %s157
      %s174 = sphi 0, %s158
      %s180 = sphi 0, %s182
      %s183 = sphi 0, %s180
      %s184 = sphi 0, %s183
      %s200 = sphi 0, %s184
      %s204 = sphi 0, %s204
      %s206 = sphi 0, %s204
      %s207 = sphi 0, %s206
      %s221 = sphi 0, %s207
      %s227 = sphi 0, %s229
      %s230 = sphi 0, %s227
      %s231 = sphi 0, %s230
      %s247 = sphi 0, %s231
    $region4: #{tpu_custom_call.1} parent=1 // loop_header_branch
      %31 = sbr.rel (%p29) target = $region8
    $region5: #{tpu_custom_call.1} parent=1 // loop_body
      %s33 = ssub.s32 %s28, 1
      %s34 = ssub.s32 %s28, 2
      %s41 = sadd.s32 1, %s36
      %p42 = scmp.ge.s32.totalorder %s41, 2
      %s43 = scalar_select %p42, 0, %s41
      %s44 = sadd.s32 1, %s35
      %s45 = scalar_select %p42, %s44, %s35
      %p46 = scmp.ge.s32.totalorder %s45, 2
      %s47 = scalar_select %p46, 0, %s45
      %s48 = ssub.s32 %s35, %s47
      %p49 = scmp.eq.s32.totalorder %s48, 0
      %s51 = sadd.s32 %s50, 1
      %s52 = scalar_select %p49, %s50, %s51
      %p55 = pneg %p49
      %p56 = scmp.eq.s32.totalorder %s28, 3
      %p57 = por %p55, %p56
      %p58 = scmp.ne.s32.totalorder %s50, %s53
      %p59 = scmp.eq.s32.totalorder %s28, 0
      %p60 = por %p58, %p59
      %p61 = scmp.ne.s32.totalorder %s50, %s53
      %p62 = scmp.eq.s32.totalorder %s33, 3
      %p63 = por %p61, %p62
      %p64 = scmp.ne.s32.totalorder %s53, %s54
      %p65 = scmp.eq.s32.totalorder %s33, 0
      %p66 = por %p64, %p65
      %p67 = scmp.ne.s32.totalorder %s53, %s54
      %p68 = scmp.eq.s32.totalorder %s34, 3
      %p69 = por %p67, %p68
      %p71 = scmp.ne.s32.totalorder %s54, %s70
      %p72 = scmp.eq.s32.totalorder %s34, 0
      %p73 = por %p71, %p72
      %s74 = ssub.s32 %s36, %s43
      %p75 = scmp.eq.s32.totalorder %s74, 0
      %s77 = sadd.s32 %s76, 1
      %s78 = scalar_select %p75, %s76, %s77
      %p81 = pneg %p75
      %p82 = scmp.eq.s32.totalorder %s28, 3
      %p83 = por %p81, %p82
      %p84 = scmp.ne.s32.totalorder %s76, %s79
      %p85 = scmp.eq.s32.totalorder %s28, 0
      %p86 = por %p84, %p85
      %p87 = scmp.ne.s32.totalorder %s76, %s79
      %p88 = scmp.eq.s32.totalorder %s33, 3
      %p89 = por %p87, %p88
      %p90 = scmp.ne.s32.totalorder %s79, %s80
      %p91 = scmp.eq.s32.totalorder %s33, 0
      %p92 = por %p90, %p91
      %p93 = scmp.ne.s32.totalorder %s79, %s80
      %p94 = scmp.eq.s32.totalorder %s34, 3
      %p95 = por %p93, %p94
      %p97 = scmp.ne.s32.totalorder %s80, %s96
      %p98 = scmp.eq.s32.totalorder %s34, 0
      %p99 = por %p97, %p98
      %s100 = ssub.s32 %s36, %s43
      %p101 = scmp.eq.s32.totalorder %s100, 0
      %s103 = sadd.s32 %s102, 1
      %s104 = scalar_select %p101, %s102, %s103
      %p107 = pneg %p101
      %p108 = scmp.eq.s32.totalorder %s28, 3
      %p109 = por %p107, %p108
      %p110 = scmp.ne.s32.totalorder %s102, %s105
      %p111 = scmp.eq.s32.totalorder %s28, 0
      %p112 = por %p110, %p111
      %p113 = scmp.ne.s32.totalorder %s102, %s105
      %p114 = scmp.eq.s32.totalorder %s33, 3
      %p115 = por %p113, %p114
      %p116 = scmp.ne.s32.totalorder %s105, %s106
      %p117 = scmp.eq.s32.totalorder %s33, 0
      %p118 = por %p116, %p117
      %p119 = scmp.ne.s32.totalorder %s105, %s106
      %p120 = scmp.eq.s32.totalorder %s34, 3
      %p121 = por %p119, %p120
      %p123 = scmp.ne.s32.totalorder %s106, %s122
      %p124 = scmp.eq.s32.totalorder %s34, 0
      %p125 = por %p123, %p124
      %s126 = ssub.s32 %s36, %s43
      %p127 = scmp.eq.s32.totalorder %s126, 0
      %s129 = sadd.s32 %s128, 1
      %s130 = scalar_select %p127, %s128, %s129
      %p133 = pneg %p127
      %p134 = scmp.eq.s32.totalorder %s28, 3
      %p135 = por %p133, %p134
      %p136 = scmp.ne.s32.totalorder %s128, %s131
      %p137 = scmp.eq.s32.totalorder %s28, 0
      %p138 = por %p136, %p137
      %p139 = scmp.ne.s32.totalorder %s128, %s131
      %p140 = scmp.eq.s32.totalorder %s33, 3
      %p141 = por %p139, %p140
      %p142 = scmp.ne.s32.totalorder %s131, %s132
      %p143 = scmp.eq.s32.totalorder %s33, 0
      %p144 = por %p142, %p143
      %p145 = scmp.ne.s32.totalorder %s131, %s132
      %p146 = scmp.eq.s32.totalorder %s34, 3
      %p147 = por %p145, %p146
      %p149 = scmp.ne.s32.totalorder %s132, %s148
      %p150 = scmp.eq.s32.totalorder %s34, 0
      %p151 = por %p149, %p150
      %s152 = ssub.s32 %s36, %s43
      %p153 = scmp.eq.s32.totalorder %s152, 0
      %s155 = sadd.s32 %s154, 1
      %s156 = scalar_select %p153, %s154, %s155
      %p159 = pneg %p153
      %p160 = scmp.eq.s32.totalorder %s28, 3
      %p161 = por %p159, %p160
      %p162 = scmp.ne.s32.totalorder %s154, %s157
      %p163 = scmp.eq.s32.totalorder %s28, 0
      %p164 = por %p162, %p163
      %p165 = scmp.ne.s32.totalorder %s154, %s157
      %p166 = scmp.eq.s32.totalorder %s33, 3
      %p167 = por %p165, %p166
      %p168 = scmp.ne.s32.totalorder %s157, %s158
      %p169 = scmp.eq.s32.totalorder %s33, 0
      %p170 = por %p168, %p169
      %p171 = scmp.ne.s32.totalorder %s157, %s158
      %p172 = scmp.eq.s32.totalorder %s34, 3
      %p173 = por %p171, %p172
      %p175 = scmp.ne.s32.totalorder %s158, %s174
      %p176 = scmp.eq.s32.totalorder %s34, 0
      %p177 = por %p175, %p176
      %s178 = ssub.s32 %s36, %s43
      %p179 = scmp.eq.s32.totalorder %s178, 0
      %s181 = sadd.s32 %s180, 1
      %s182 = scalar_select %p179, %s180, %s181
      %p185 = pneg %p179
      %p186 = scmp.eq.s32.totalorder %s28, 3
      %p187 = por %p185, %p186
      %p188 = scmp.ne.s32.totalorder %s180, %s183
      %p189 = scmp.eq.s32.totalorder %s28, 0
      %p190 = por %p188, %p189
      %p191 = scmp.ne.s32.totalorder %s180, %s183
      %p192 = scmp.eq.s32.totalorder %s33, 3
      %p193 = por %p191, %p192
      %p194 = scmp.ne.s32.totalorder %s183, %s184
      %p195 = scmp.eq.s32.totalorder %s33, 0
      %p196 = por %p194, %p195
      %p197 = scmp.ne.s32.totalorder %s183, %s184
      %p198 = scmp.eq.s32.totalorder %s34, 3
      %p199 = por %p197, %p198
      %p201 = scmp.ne.s32.totalorder %s184, %s200
      %p202 = scmp.eq.s32.totalorder %s34, 0
      %p203 = por %p201, %p202
      %s205 = sadd.s32 %s204, 1
      %p208 = scmp.eq.s32.totalorder %s28, 3
      %p209 = scmp.ne.s32.totalorder %s204, %s206
      %p210 = scmp.eq.s32.totalorder %s28, 0
      %p211 = por %p209, %p210
      %p212 = scmp.ne.s32.totalorder %s204, %s206
      %p213 = scmp.eq.s32.totalorder %s33, 3
      %p214 = por %p212, %p213
      %p215 = scmp.ne.s32.totalorder %s206, %s207
      %p216 = scmp.eq.s32.totalorder %s33, 0
      %p217 = por %p215, %p216
      %p218 = scmp.ne.s32.totalorder %s206, %s207
      %p219 = scmp.eq.s32.totalorder %s34, 3
      %p220 = por %p218, %p219
      %p222 = scmp.ne.s32.totalorder %s207, %s221
      %p223 = scmp.eq.s32.totalorder %s34, 0
      %p224 = por %p222, %p223
      %s225 = ssub.s32 %s35, %s47
      %p226 = scmp.eq.s32.totalorder %s225, 0
      %s228 = sadd.s32 %s227, 1
      %s229 = scalar_select %p226, %s227, %s228
      %p232 = pneg %p226
      %p233 = scmp.eq.s32.totalorder %s28, 3
      %p234 = por %p232, %p233
      %p235 = scmp.ne.s32.totalorder %s227, %s230
      %p236 = scmp.eq.s32.totalorder %s28, 0
      %p237 = por %p235, %p236
      %p238 = scmp.ne.s32.totalorder %s227, %s230
      %p239 = scmp.eq.s32.totalorder %s33, 3
      %p240 = por %p238, %p239
      %p241 = scmp.ne.s32.totalorder %s230, %s231
      %p242 = scmp.eq.s32.totalorder %s33, 0
      %p243 = por %p241, %p242
      %p244 = scmp.ne.s32.totalorder %s230, %s231
      %p245 = scmp.eq.s32.totalorder %s34, 3
      %p246 = por %p244, %p245
      %p248 = scmp.ne.s32.totalorder %s231, %s247
      %p249 = scmp.eq.s32.totalorder %s34, 0
      %p250 = por %p248, %p249
      %p251 = scmp.le.s32.totalorder 1, %s28
      %p252 = scmp.lt.s32.totalorder %s28, 5
      %p253 = pnand %p251, %p252
      %p254 = pneg %p253
      // Predicated region
      $region9: #{tpu_custom_call.1} parent=5 // pred_check
        _
      $region10: #{tpu_custom_call.1} parent=5 // pred_check_branch
        %256 = sbr.rel (%p253) target = $region12
      $region11: #{tpu_custom_call.1} parent=5 // pred_region
        %s257 = ssub.s32 %s28, 1
        // Predicated region
        $region13: #{tpu_custom_call.1} parent=11 // pred_check
          %p258 = pneg %p217
        $region14: #{tpu_custom_call.1} parent=11 // pred_check_branch
          %260 = sbr.rel (%p258) target = $region16
        $region15: #{tpu_custom_call.1} parent=11 // pred_region
          %s262 = ssub.s32 16, 16
          %263 = vsyncadd [#allocation14], %s262
          %s265 = sshll.u32 [#allocation15], 4
          %s266 = int_to_ptr.vmem [resolvable:$true] %s265
          %268 = dma.hbm_to_vmem [thread:$0]  %s6, 16, %s266, [#allocation14]
        $region16: #{tpu_custom_call.1} parent=11 // pred_fallthru
          _
      $region12: #{tpu_custom_call.1} parent=5 // pred_fallthru
        _
      %p269 = scmp.lt.s32.totalorder %s28, 4
      // Predicated region
      $region17: #{tpu_custom_call.1} parent=5 // pred_check
        %p270 = pneg %p269
      $region18: #{tpu_custom_call.1} parent=5 // pred_check_branch
        %272 = sbr.rel (%p270) target = $region20
      $region19: #{tpu_custom_call.1} parent=5 // pred_region
        // Predicated region
        $region21: #{tpu_custom_call.1} parent=19 // pred_check
          %p273 = pneg %p60
        $region22: #{tpu_custom_call.1} parent=19 // pred_check_branch
          %275 = sbr.rel (%p273) target = $region24
        $region23: #{tpu_custom_call.1} parent=19 // pred_region
          %s276 = sand.u32 %s50, 1
          %s277 = scalar_lea.sflag [#allocation5], %s276
          %s278 = sand.u32 %s50, 1
          %s279 = smul.addr %s278, 64
          %s280 = scalar_lea.vmem [#allocation4], %s279
          %s282 = ssub.s32 1024, 1024
          %283 = vsyncadd %s277, %s282
          %s284 = smul.addr %s35, 8
          %s285 = smul.addr %s284, 128
          %s286 = scalar_lea.hbm %s0, %s285
          %s287 = sshll.u32 %s280, 4
          %s288 = int_to_ptr.vmem [resolvable:$true] %s287
          %293 = dma.hbm_to_vmem [thread:$0]  %s286, 1024, %s288, %s277, 128, 128, 8
        $region24: #{tpu_custom_call.1} parent=19 // pred_fallthru
          _
        // Predicated region
        $region25: #{tpu_custom_call.1} parent=19 // pred_check
          %p294 = pneg %p86
        $region26: #{tpu_custom_call.1} parent=19 // pred_check_branch
          %296 = sbr.rel (%p294) target = $region28
        $region27: #{tpu_custom_call.1} parent=19 // pred_region
          %s297 = sand.u32 %s28, 1
          %s298 = scalar_lea.sflag [#allocation8], %s297
          %s299 = sand.u32 %s76, 1
          %s300 = smul.addr %s299, 128
          %s301 = scalar_lea.vmem [#allocation7], %s300
          %s302 = smul.u32 2, %s36
          %s304 = ssub.s32 2048, 2048
          %305 = vsyncadd %s298, %s304
          %s306 = smul.addr %s302, 128
          %s307 = scalar_lea.hbm %s1, %s306
          %s308 = sshll.u32 %s301, 4
          %s309 = int_to_ptr.vmem [resolvable:$true] %s308
          %314 = dma.hbm_to_vmem [thread:$0]  %s307, 2048, %s309, %s298, 512, 256, 16
        $region28: #{tpu_custom_call.1} parent=19 // pred_fallthru
          _
        // Predicated region
        $region29: #{tpu_custom_call.1} parent=19 // pred_check
          %p315 = pneg %p112
        $region30: #{tpu_custom_call.1} parent=19 // pred_check_branch
          %317 = sbr.rel (%p315) target = $region32
        $region31: #{tpu_custom_call.1} parent=19 // pred_region
          %s318 = sand.u32 %s28, 1
          %s319 = scalar_lea.sflag [#allocation8], %s318
          %s320 = sand.u32 %s102, 1
          %s321 = smul.addr %s320, 2
          %s322 = scalar_lea.vmem [#allocation9], %s321
          %s323 = smul.u32 2, %s36
          %s325 = ssub.s32 32, 32
          %326 = vsyncadd %s319, %s325
          %s327 = smul.addr %s323, 16
          %s328 = scalar_lea.hbm %s2, %s327
          %s330 = sshll.u32 %s322, 4
          %s331 = int_to_ptr.vmem [resolvable:$true] %s330
          %333 = dma.hbm_to_vmem [thread:$0]  %s328, 32, %s331, %s319
        $region32: #{tpu_custom_call.1} parent=19 // pred_fallthru
          _
        // Predicated region
        $region33: #{tpu_custom_call.1} parent=19 // pred_check
          %p334 = pneg %p138
        $region34: #{tpu_custom_call.1} parent=19 // pred_check_branch
          %336 = sbr.rel (%p334) target = $region36
        $region35: #{tpu_custom_call.1} parent=19 // pred_region
          %s337 = sand.u32 %s28, 1
          %s338 = scalar_lea.sflag [#allocation11], %s337
          %s339 = sand.u32 %s128, 1
          %s340 = smul.addr %s339, 32
          %s341 = scalar_lea.vmem [#allocation10], %s340
          %s342 = smul.u32 2, %s36
          %s344 = ssub.s32 512, 512
          %345 = vsyncadd %s338, %s344
          %s346 = smul.addr %s342, 128
          %s347 = scalar_lea.hbm %s3, %s346
          %s348 = sshll.u32 %s341, 4
          %s349 = int_to_ptr.vmem [resolvable:$true] %s348
          %354 = dma.hbm_to_vmem [thread:$0]  %s347, 512, %s349, %s338, 512, 256, 16
        $region36: #{tpu_custom_call.1} parent=19 // pred_fallthru
          _
        // Predicated region
        $region37: #{tpu_custom_call.1} parent=19 // pred_check
          %p355 = pneg %p164
        $region38: #{tpu_custom_call.1} parent=19 // pred_check_branch
          %357 = sbr.rel (%p355) target = $region40
        $region39: #{tpu_custom_call.1} parent=19 // pred_region
          %s358 = sand.u32 %s28, 1
          %s359 = scalar_lea.sflag [#allocation11], %s358
          %s360 = sand.u32 %s154, 1
          %s361 = smul.addr %s360, 2
          %s362 = scalar_lea.vmem [#allocation12], %s361
          %s363 = smul.u32 2, %s36
          %s365 = ssub.s32 32, 32
          %366 = vsyncadd %s359, %s365
          %s367 = smul.addr %s363, 16
          %s368 = scalar_lea.hbm %s4, %s367
          %s370 = sshll.u32 %s362, 4
          %s371 = int_to_ptr.vmem [resolvable:$true] %s370
          %373 = dma.hbm_to_vmem [thread:$0]  %s368, 32, %s371, %s359
        $region40: #{tpu_custom_call.1} parent=19 // pred_fallthru
          _
        // Predicated region
        $region41: #{tpu_custom_call.1} parent=19 // pred_check
          %p374 = pneg %p190
        $region42: #{tpu_custom_call.1} parent=19 // pred_check_branch
          %376 = sbr.rel (%p374) target = $region44
        $region43: #{tpu_custom_call.1} parent=19 // pred_region
          %s377 = sand.u32 %s28, 1
          %s378 = scalar_lea.sflag [#allocation14], %s377
          %s379 = sand.u32 %s180, 1
          %s380 = smul.addr %s379, 256
          %s381 = scalar_lea.vmem [#allocation13], %s380
          %s382 = smul.u32 32, %s36
          %s384 = ssub.s32 4096, 4096
          %385 = vsyncadd %s378, %s384
          %s386 = smul.addr %s382, 128
          %s387 = scalar_lea.hbm %s5, %s386
          %s388 = sshll.u32 %s381, 4
          %s389 = int_to_ptr.vmem [resolvable:$true] %s388
          %394 = dma.hbm_to_vmem [thread:$0]  %s387, 4096, %s389, %s378, 128, 128, 8
        $region44: #{tpu_custom_call.1} parent=19 // pred_fallthru
          _
      $region20: #{tpu_custom_call.1} parent=5 // pred_fallthru
        _
      %p395 = scmp.le.s32.totalorder 1, %s28
      %p396 = scmp.lt.s32.totalorder %s28, 5
      %p397 = pnand %p395, %p396
      %p398 = pneg %p397
      // Predicated region
      $region45: #{tpu_custom_call.1} parent=5 // pred_check
        _
      $region46: #{tpu_custom_call.1} parent=5 // pred_check_branch
        %400 = sbr.rel (%p397) target = $region48
      $region47: #{tpu_custom_call.1} parent=5 // pred_region
        %s401 = ssub.s32 %s28, 1
        %s402 = sand.u32 %s53, 1
        %s403 = scalar_lea.sflag [#allocation5], %s402
        %s404 = sand.u32 %s53, 1
        %s405 = smul.addr %s404, 64
        %s406 = scalar_lea.vmem [#allocation4], %s405
        // Predicated region
        $region49: #{tpu_custom_call.1} parent=47 // pred_check
          %p407 = pneg %p66
        $region50: #{tpu_custom_call.1} parent=47 // pred_check_branch
          %409 = sbr.rel (%p407) target = $region52
        $region51: #{tpu_custom_call.1} parent=47 // pred_region
          %410 = dma.done %s403, 1024
        $region52: #{tpu_custom_call.1} parent=47 // pred_fallthru
          _
        %s411 = sand.u32 %s33, 1
        %s412 = scalar_lea.sflag [#allocation8], %s411
        %s413 = sand.u32 %s79, 1
        %s414 = smul.addr %s413, 128
        %s415 = scalar_lea.vmem [#allocation7], %s414
        // Predicated region
        $region53: #{tpu_custom_call.1} parent=47 // pred_check
          %p416 = pneg %p92
        $region54: #{tpu_custom_call.1} parent=47 // pred_check_branch
          %418 = sbr.rel (%p416) target = $region56
        $region55: #{tpu_custom_call.1} parent=47 // pred_region
          %419 = dma.done %s412, 2048
        $region56: #{tpu_custom_call.1} parent=47 // pred_fallthru
          _
        %s420 = sand.u32 %s33, 1
        %s421 = scalar_lea.sflag [#allocation8], %s420
        %s422 = sand.u32 %s105, 1
        %s423 = smul.addr %s422, 2
        %s424 = scalar_lea.vmem [#allocation9], %s423
        // Predicated region
        $region57: #{tpu_custom_call.1} parent=47 // pred_check
          %p425 = pneg %p118
        $region58: #{tpu_custom_call.1} parent=47 // pred_check_branch
          %427 = sbr.rel (%p425) target = $region60
        $region59: #{tpu_custom_call.1} parent=47 // pred_region
          %428 = dma.done %s421, 32
        $region60: #{tpu_custom_call.1} parent=47 // pred_fallthru
          _
        %s429 = sand.u32 %s33, 1
        %s430 = scalar_lea.sflag [#allocation11], %s429
        %s431 = sand.u32 %s131, 1
        %s432 = smul.addr %s431, 32
        %s433 = scalar_lea.vmem [#allocation10], %s432
        // Predicated region
        $region61: #{tpu_custom_call.1} parent=47 // pred_check
          %p434 = pneg %p144
        $region62: #{tpu_custom_call.1} parent=47 // pred_check_branch
          %436 = sbr.rel (%p434) target = $region64
        $region63: #{tpu_custom_call.1} parent=47 // pred_region
          %437 = dma.done %s430, 512
        $region64: #{tpu_custom_call.1} parent=47 // pred_fallthru
          _
        %s438 = sand.u32 %s33, 1
        %s439 = scalar_lea.sflag [#allocation11], %s438
        %s440 = sand.u32 %s157, 1
        %s441 = smul.addr %s440, 2
        %s442 = scalar_lea.vmem [#allocation12], %s441
        // Predicated region
        $region65: #{tpu_custom_call.1} parent=47 // pred_check
          %p443 = pneg %p170
        $region66: #{tpu_custom_call.1} parent=47 // pred_check_branch
          %445 = sbr.rel (%p443) target = $region68
        $region67: #{tpu_custom_call.1} parent=47 // pred_region
          %446 = dma.done %s439, 32
        $region68: #{tpu_custom_call.1} parent=47 // pred_fallthru
          _
        %s447 = sand.u32 %s33, 1
        %s448 = scalar_lea.sflag [#allocation14], %s447
        %s449 = sand.u32 %s183, 1
        %s450 = smul.addr %s449, 256
        %s451 = scalar_lea.vmem [#allocation13], %s450
        // Predicated region
        $region69: #{tpu_custom_call.1} parent=47 // pred_check
          %p452 = pneg %p196
        $region70: #{tpu_custom_call.1} parent=47 // pred_check_branch
          %454 = sbr.rel (%p452) target = $region72
        $region71: #{tpu_custom_call.1} parent=47 // pred_region
          %455 = dma.done %s448, 4096
        $region72: #{tpu_custom_call.1} parent=47 // pred_fallthru
          _
        // Predicated region
        $region73: #{tpu_custom_call.1} parent=47 // pred_check
          %p456 = pneg %p217
        $region74: #{tpu_custom_call.1} parent=47 // pred_check_branch
          %458 = sbr.rel (%p456) target = $region76
        $region75: #{tpu_custom_call.1} parent=47 // pred_region
          %459 = dma.done [#allocation14], 16
        $region76: #{tpu_custom_call.1} parent=47 // pred_fallthru
          _
        %s460 = sand.u32 %s53, 1
        %s461 = scalar_lea.sflag [#allocation5], %s460
        %s462 = sand.u32 %s53, 1
        %s463 = smul.addr %s462, 64
        %s464 = scalar_lea.vmem [#allocation4], %s463
        %p465 = pneg %p66
        %p466 = pneg %p63
        %s467 = sand.u32 %s33, 1
        %s468 = scalar_lea.sflag [#allocation8], %s467
        %s469 = sand.u32 %s79, 1
        %s470 = smul.addr %s469, 128
        %s471 = scalar_lea.vmem [#allocation7], %s470
        %p472 = pneg %p92
        %p473 = pneg %p89
        %s474 = sand.u32 %s33, 1
        %s475 = scalar_lea.sflag [#allocation8], %s474
        %s476 = sand.u32 %s105, 1
        %s477 = smul.addr %s476, 2
        %s478 = scalar_lea.vmem [#allocation9], %s477
        %p479 = pneg %p118
        %p480 = pneg %p115
        %s481 = sand.u32 %s33, 1
        %s482 = scalar_lea.sflag [#allocation11], %s481
        %s483 = sand.u32 %s131, 1
        %s484 = smul.addr %s483, 32
        %s485 = scalar_lea.vmem [#allocation10], %s484
        %p486 = pneg %p144
        %p487 = pneg %p141
        %s488 = sand.u32 %s33, 1
        %s489 = scalar_lea.sflag [#allocation11], %s488
        %s490 = sand.u32 %s157, 1
        %s491 = smul.addr %s490, 2
        %s492 = scalar_lea.vmem [#allocation12], %s491
        %p493 = pneg %p170
        %p494 = pneg %p167
        %s495 = sand.u32 %s33, 1
        %s496 = scalar_lea.sflag [#allocation14], %s495
        %s497 = sand.u32 %s183, 1
        %s498 = smul.addr %s497, 256
        %s499 = scalar_lea.vmem [#allocation13], %s498
        %p500 = pneg %p196
        %p501 = pneg %p193
        %p502 = pneg %p217
        %p503 = pneg %p214
        %p504 = pneg %p243
        %p505 = pneg %p240
        %s506 = sand.u32 %s230, 1
        %s507 = scalar_lea.sflag [#allocation6], %s506
        %s508 = sand.u32 %s230, 1
        %s509 = smul.addr %s508, 64
        %s510 = scalar_lea.vmem [#allocation16], %s509
        %s511 = smul.u32 2, %s38
        %s512 = smul.u32 2, %s38
        %s513 = smul.u32 2, %s38
        %s514 = smul.u32 2, %s38
        %s515 = smul.u32 32, %s38
        %p517 = scmp.eq.s32.totalorder %s38, 0
        // Predicated region
        $region77: #{tpu_custom_call.1} parent=47 // pred_check
          %p518 = pneg %p517
        $region78: #{tpu_custom_call.1} parent=47 // pred_check_branch
          %520 = sbr.rel (%p518) target = $region80
        $region79: #{tpu_custom_call.1} parent=47 // pred_region
          %521 = vst [vmem:[#allocation2] sm:$0xff] 0.0
          %522 = vst [vmem:[#allocation2 + $0x8] sm:$0xff] 0.0
          %523 = vst [vmem:[#allocation2 + $0x10] sm:$0xff] 0.0
          %524 = vst [vmem:[#allocation2 + $0x18] sm:$0xff] 0.0
          %525 = vst [vmem:[#allocation2 + $0x20] sm:$0x1] 0.0
          %526 = vst [vmem:[#allocation2 + $0x28] sm:$0x1] 0.0
          %527 = vst [vmem:[#allocation2 + $0x30] sm:$0xff] 0.0
          %528 = vst [vmem:[#allocation2 + $0x38] sm:$0xff] 0.0
          %529 = vst [vmem:[#allocation2 + $0x40] sm:$0xff] 0.0
          %530 = vst [vmem:[#allocation2 + $0x48] sm:$0xff] 0.0
          %531 = vst [vmem:[#allocation2 + $0x50] sm:$0x1] 0.0
          %532 = vst [vmem:[#allocation2 + $0x58] sm:$0x1] 0.0
          %533 = vst [vmem:[#allocation2 + $0x60] sm:$0xff] 0.0
          %534 = vst [vmem:[#allocation2 + $0x68] sm:$0xff] 0.0
          %535 = vst [vmem:[#allocation2 + $0x70] sm:$0xff] 0.0
          %536 = vst [vmem:[#allocation2 + $0x78] sm:$0xff] 0.0
          %537 = vst [vmem:[#allocation2 + $0x80] sm:$0x1] 0.0
          %538 = vst [vmem:[#allocation2 + $0x88] sm:$0x1] 0.0
          %539 = vst [vmem:[#allocation2 + $0x90] sm:$0xff] 0.0
          %540 = vst [vmem:[#allocation2 + $0x98] sm:$0xff] 0.0
          %541 = vst [vmem:[#allocation2 + $0xa0] sm:$0xff] 0.0
          %542 = vst [vmem:[#allocation2 + $0xa8] sm:$0xff] 0.0
          %543 = vst [vmem:[#allocation2 + $0xb0] sm:$0x1] 0.0
          %544 = vst [vmem:[#allocation2 + $0xb8] sm:$0x1] 0.0
          %545 = vst [vmem:[#allocation2 + $0xc0] sm:$0xff] 0.0
          %546 = vst [vmem:[#allocation2 + $0xc8] sm:$0xff] 0.0
          %547 = vst [vmem:[#allocation2 + $0xd0] sm:$0xff] 0.0
          %548 = vst [vmem:[#allocation2 + $0xd8] sm:$0xff] 0.0
          %549 = vst [vmem:[#allocation2 + $0xe0] sm:$0x1] 0.0
          %550 = vst [vmem:[#allocation2 + $0xe8] sm:$0x1] 0.0
          %551 = vst [vmem:[#allocation2 + $0xf0] sm:$0xff] 0.0
          %552 = vst [vmem:[#allocation2 + $0xf8] sm:$0xff] 0.0
          %553 = vst [vmem:[#allocation2 + $0x100] sm:$0xff] 0.0
          %554 = vst [vmem:[#allocation2 + $0x108] sm:$0xff] 0.0
          %555 = vst [vmem:[#allocation2 + $0x110] sm:$0x1] 0.0
          %556 = vst [vmem:[#allocation2 + $0x118] sm:$0x1] 0.0
          %557 = vst [vmem:[#allocation2 + $0x120] sm:$0xff] 0.0
          %558 = vst [vmem:[#allocation2 + $0x128] sm:$0xff] 0.0
          %559 = vst [vmem:[#allocation2 + $0x130] sm:$0xff] 0.0
          %560 = vst [vmem:[#allocation2 + $0x138] sm:$0xff] 0.0
          %561 = vst [vmem:[#allocation2 + $0x140] sm:$0x1] 0.0
          %562 = vst [vmem:[#allocation2 + $0x148] sm:$0x1] 0.0
          %563 = vst [vmem:[#allocation2 + $0x150] sm:$0xff] 0.0
          %564 = vst [vmem:[#allocation2 + $0x158] sm:$0xff] 0.0
          %565 = vst [vmem:[#allocation2 + $0x160] sm:$0xff] 0.0
          %566 = vst [vmem:[#allocation2 + $0x168] sm:$0xff] 0.0
          %567 = vst [vmem:[#allocation2 + $0x170] sm:$0x1] 0.0
          %568 = vst [vmem:[#allocation2 + $0x178] sm:$0x1] 0.0
          %569 = vst [vmem:[#allocation2 + $0x180] sm:$0xff] 0.0
          %570 = vst [vmem:[#allocation2 + $0x188] sm:$0xff] 0.0
          %571 = vst [vmem:[#allocation2 + $0x190] sm:$0xff] 0.0
          %572 = vst [vmem:[#allocation2 + $0x198] sm:$0xff] 0.0
          %573 = vst [vmem:[#allocation2 + $0x1a0] sm:$0x1] 0.0
          %574 = vst [vmem:[#allocation2 + $0x1a8] sm:$0x1] 0.0
          %575 = vst [vmem:[#allocation2 + $0x1b0] sm:$0xff] 0.0
          %576 = vst [vmem:[#allocation2 + $0x1b8] sm:$0xff] 0.0
          %577 = vst [vmem:[#allocation2 + $0x1c0] sm:$0xff] 0.0
          %578 = vst [vmem:[#allocation2 + $0x1c8] sm:$0xff] 0.0
          %579 = vst [vmem:[#allocation2 + $0x1d0] sm:$0x1] 0.0
          %580 = vst [vmem:[#allocation2 + $0x1d8] sm:$0x1] 0.0
          %vm581 = vcmask 523264
          %582 = vst.msk [vmem:[#allocation3] sm:$0xff] %vm581, 0.0
          %583 = vst.msk [vmem:[#allocation3 + $0x8] sm:$0xff] %vm581, 0.0
          %584 = vst.msk [vmem:[#allocation3 + $0x10] sm:$0xff] %vm581, 0.0
          %585 = vst.msk [vmem:[#allocation3 + $0x18] sm:$0xff] %vm581, 0.0
          %586 = vst.msk [vmem:[#allocation3 + $0x20] sm:$0xff] %vm581, 0.0
          %587 = vst.msk [vmem:[#allocation3 + $0x28] sm:$0xff] %vm581, 0.0
          %588 = vst.msk [vmem:[#allocation3 + $0x30] sm:$0xff] %vm581, 0.0
          %589 = vst.msk [vmem:[#allocation3 + $0x38] sm:$0xff] %vm581, 0.0
        $region80: #{tpu_custom_call.1} parent=47 // pred_fallthru
          _
        %v590 = vld [vmem:[%s406] sm:$0xff]
        %v591 = vld [vmem:[%s406 + $0x8] sm:$0xff]
        %v592 = vld [vmem:[%s406 + $0x10] sm:$0xff]
        %v593 = vld [vmem:[%s406 + $0x18] sm:$0xff]
        %v594 = vld [vmem:[%s406 + $0x20] sm:$0xff]
        %v595 = vld [vmem:[%s406 + $0x28] sm:$0xff]
        %v596 = vld [vmem:[%s406 + $0x30] sm:$0xff]
        %v597 = vld [vmem:[%s406 + $0x38] sm:$0xff]
        %v598 = vld [vmem:[%s415] sm:$0xff]
        %v599 = vld [vmem:[%s415 + $0x8] sm:$0xff]
        %v600 = vld [vmem:[%s415 + $0x10] sm:$0xff]
        %v601 = vld [vmem:[%s415 + $0x18] sm:$0xff]
        %v602 = vld [vmem:[%s415 + $0x20] sm:$0xff]
        %v603 = vld [vmem:[%s415 + $0x28] sm:$0xff]
        %v604 = vld [vmem:[%s415 + $0x30] sm:$0xff]
        %v605 = vld [vmem:[%s415 + $0x38] sm:$0xff]
        %v606 = vld [vmem:[%s415 + $0x40] sm:$0xff]
        %v607 = vld [vmem:[%s415 + $0x48] sm:$0xff]
        %v608 = vld [vmem:[%s415 + $0x50] sm:$0xff]
        %v609 = vld [vmem:[%s415 + $0x58] sm:$0xff]
        %v610 = vld [vmem:[%s415 + $0x60] sm:$0xff]
        %v611 = vld [vmem:[%s415 + $0x68] sm:$0xff]
        %v612 = vld [vmem:[%s415 + $0x70] sm:$0xff]
        %v613 = vld [vmem:[%s415 + $0x78] sm:$0xff]
        %v614 = vpack.c.bf16 %v591, %v590
        %v615 = vpack.c.bf16 %v593, %v592
        %v616 = vpack.c.bf16 %v595, %v594
        %v617 = vpack.c.bf16 %v597, %v596
        %v618 = vpack.c.bf16 %v600, %v598
        %v619 = vpack.c.bf16 %v601, %v599
        %v620 = vpack.c.bf16 %v604, %v602
        %v621 = vpack.c.bf16 %v605, %v603
        %v622 = vpack.c.bf16 %v608, %v606
        %v623 = vpack.c.bf16 %v609, %v607
        %v624 = vpack.c.bf16 %v612, %v610
        %v625 = vpack.c.bf16 %v613, %v611
        %v626 = vld [vmem:[%s424] sm:$0x3]
        %v628 = vlaneseq
        %v629 = vshrl.u32 %v628, 7
        %v630 = vsub.s32 0, %v629
        %v631 = vrot.slane %v626, %v630
        %v632 = vlaneseq
        %v633 = vshrl.u32 %v632, 7
        %v634 = vsub.s32 1, %v633
        %v635 = vrot.slane %v626, %v634
        %vm638 = vcmask 523264
        %v640 = vsel %vm638, %v614, 0
        %v643 = vsel %vm638, %v615, 0
        %v646 = vsel %vm638, %v616, 0
        %v649 = vsel %vm638, %v617, 0
        %651 = vmatprep.subr.bf16.mxu0 %v619
        %652 = vmatpush1.bf16.msra.mxu0 %v618
        %653 = vmatprep.subr.bf16.mxu0 %v621
        %654 = vmatpush1.bf16.msra.mxu0 %v620
        %655 = vmatprep.subr.bf16.mxu0 %v623
        %656 = vmatpush1.bf16.msra.mxu0 %v622
        %657 = vmatprep.subr.bf16.mxu0 %v625
        %658 = vmatpush1.bf16.msra.mxu0 %v624
        %659 = vmatprep.subr.bf16.mxu0 0
        %660 = vmatpush1.bf16.msra.mxu0 0
        %661 = vmatprep.subr.bf16.mxu0 0
        %662 = vmatpush1.bf16.msra.mxu0 0
        %663 = vmatprep.subr.bf16.mxu0 0
        %664 = vmatpush1.bf16.msra.mxu0 0
        %665 = vmatprep.subr.bf16.mxu0 0
        %666 = vmatpush1.bf16.msra.mxu0 0
        %667 = vmatprep.subr.bf16.mxu0 0
        %668 = vmatpush1.bf16.msra.mxu0 0
        %669 = vmatprep.subr.bf16.mxu0 0
        %670 = vmatpush1.bf16.msra.mxu0 0
        %671 = vmatprep.subr.bf16.mxu0 0
        %672 = vmatpush1.bf16.msra.mxu0 0
        %673 = vmatprep.subr.bf16.mxu0 0
        %674 = vmatpush1.bf16.msra.mxu0 0
        %675 = vmatprep.subr.bf16.mxu0 0
        %676 = vmatpush1.bf16.msra.mxu0 0
        %677 = vmatprep.subr.bf16.mxu0 0
        %678 = vmatpush1.bf16.msra.mxu0 0
        %679 = vmatprep.subr.bf16.mxu0 0
        %680 = vmatpush1.bf16.msra.mxu0 0
        %681 = vmatprep.subr.bf16.mxu0 0
        %682 = vmatpush1.bf16.msra.mxu0 0
        %683 = vmatprep.mubr.bf16.mxu0 0
        %684 = vmatmul.mubr.bf16.gmra.mrb[0].mxu0 %v640
        %v685 = vpop.f32.mrb[0].mxu0
        %v686 = vadd.f32 %v631, %v685
        %v687 = vpop.f32.mrb[0].mxu0
        %v688 = vadd.f32 %v635, %v687
        %v689 = vpop.f32.mrb[0].mxu0
        %v690 = vadd.f32 %v631, %v689
        %v691 = vpop.f32.mrb[0].mxu0
        %v692 = vadd.f32 %v635, %v691
        %693 = vmatprep.mubr.bf16.mxu0 0
        %694 = vmatmul.mubr.bf16.gmra.mrb[0].mxu0 %v643
        %v695 = vpop.f32.mrb[0].mxu0
        %v696 = vadd.f32 %v631, %v695
        %v697 = vpop.f32.mrb[0].mxu0
        %v698 = vadd.f32 %v635, %v697
        %v699 = vpop.f32.mrb[0].mxu0
        %v700 = vadd.f32 %v631, %v699
        %v701 = vpop.f32.mrb[0].mxu0
        %v702 = vadd.f32 %v635, %v701
        %703 = vmatprep.mubr.bf16.mxu0 0
        %704 = vmatmul.mubr.bf16.gmra.mrb[0].mxu0 %v646
        %v705 = vpop.f32.mrb[0].mxu0
        %v706 = vadd.f32 %v631, %v705
        %v707 = vpop.f32.mrb[0].mxu0
        %v708 = vadd.f32 %v635, %v707
        %v709 = vpop.f32.mrb[0].mxu0
        %v710 = vadd.f32 %v631, %v709
        %v711 = vpop.f32.mrb[0].mxu0
        %v712 = vadd.f32 %v635, %v711
        %713 = vmatprep.mubr.bf16.mxu0 0
        %714 = vmatmul.mubr.bf16.gmra.mrb[0].mxu0 %v649
        %v715 = vpop.f32.mrb[0].mxu0
        %v716 = vadd.f32 %v631, %v715
        %v717 = vpop.f32.mrb[0].mxu0
        %v718 = vadd.f32 %v635, %v717
        %v719 = vpop.f32.mrb[0].mxu0
        %v720 = vadd.f32 %v631, %v719
        %v721 = vpop.f32.mrb[0].mxu0
        %v722 = vadd.f32 %v635, %v721
        %723 = vdwg.mxu0
        %v724 = vmax.f32 %v686, 0.0
        %v725 = vmax.f32 %v688, 0.0
        %v726 = vmax.f32 %v690, 0.0
        %v727 = vmax.f32 %v692, 0.0
        %v728 = vmax.f32 %v696, 0.0
        %v729 = vmax.f32 %v698, 0.0
        %v730 = vmax.f32 %v700, 0.0
        %v731 = vmax.f32 %v702, 0.0
        %v732 = vmax.f32 %v706, 0.0
        %v733 = vmax.f32 %v708, 0.0
        %v734 = vmax.f32 %v710, 0.0
        %v735 = vmax.f32 %v712, 0.0
        %v736 = vmax.f32 %v716, 0.0
        %v737 = vmax.f32 %v718, 0.0
        %v738 = vmax.f32 %v720, 0.0
        %v739 = vmax.f32 %v722, 0.0
        %s740 = scalar_lea.vmem [#allocation2], 48
        %741 = vst [vmem:[%s740 + $0x10] sm:$0xff] %v724
        %742 = vst [vmem:[%s740 + $0x18] sm:$0xff] %v725
        %743 = vst [vmem:[%s740 + $0x40] sm:$0xff] %v726
        %744 = vst [vmem:[%s740 + $0x48] sm:$0xff] %v727
        %745 = vst [vmem:[%s740 + $0x70] sm:$0xff] %v728
        %746 = vst [vmem:[%s740 + $0x78] sm:$0xff] %v729
        %747 = vst [vmem:[%s740 + $0xa0] sm:$0xff] %v730
        %748 = vst [vmem:[%s740 + $0xa8] sm:$0xff] %v731
        %749 = vst [vmem:[%s740 + $0xd0] sm:$0xff] %v732
        %750 = vst [vmem:[%s740 + $0xd8] sm:$0xff] %v733
        %751 = vst [vmem:[%s740 + $0x100] sm:$0xff] %v734
        %752 = vst [vmem:[%s740 + $0x108] sm:$0xff] %v735
        %753 = vst [vmem:[%s740 + $0x130] sm:$0xff] %v736
        %754 = vst [vmem:[%s740 + $0x138] sm:$0xff] %v737
        %755 = vst [vmem:[%s740 + $0x160] sm:$0xff] %v738
        %756 = vst [vmem:[%s740 + $0x168] sm:$0xff] %v739
        %v757 = vld [vmem:[#allocation2] sm:$0x80]
        %v758 = vld [vmem:[#allocation2 + $0x8] sm:$0x80]
        %v759 = vld [vmem:[#allocation2 + $0x10] sm:$0x7f]
        %v760 = vld [vmem:[#allocation2 + $0x18] sm:$0x7f]
        %v761 = vld [vmem:[#allocation2 + $0x30] sm:$0x80]
        %v762 = vld [vmem:[#allocation2 + $0x38] sm:$0x80]
        %v763 = vld [vmem:[#allocation2 + $0x40] sm:$0x7f]
        %v764 = vld [vmem:[#allocation2 + $0x48] sm:$0x7f]
        %v765 = vld [vmem:[#allocation2 + $0x60] sm:$0x80]
        %v766 = vld [vmem:[#allocation2 + $0x68] sm:$0x80]
        %v767 = vld [vmem:[#allocation2 + $0x70] sm:$0x7f]
        %v768 = vld [vmem:[#allocation2 + $0x78] sm:$0x7f]
        %v769 = vld [vmem:[#allocation2 + $0x90] sm:$0x80]
        %v770 = vld [vmem:[#allocation2 + $0x98] sm:$0x80]
        %v771 = vld [vmem:[#allocation2 + $0xa0] sm:$0x7f]
        %v772 = vld [vmem:[#allocation2 + $0xa8] sm:$0x7f]
        %v773 = vld [vmem:[#allocation2 + $0xc0] sm:$0x80]
        %v774 = vld [vmem:[#allocation2 + $0xc8] sm:$0x80]
        %v775 = vld [vmem:[#allocation2 + $0xd0] sm:$0x7f]
        %v776 = vld [vmem:[#allocation2 + $0xd8] sm:$0x7f]
        %v777 = vld [vmem:[#allocation2 + $0xf0] sm:$0x80]
        %v778 = vld [vmem:[#allocation2 + $0xf8] sm:$0x80]
        %v779 = vld [vmem:[#allocation2 + $0x100] sm:$0x7f]
        %v780 = vld [vmem:[#allocation2 + $0x108] sm:$0x7f]
        %v781 = vld [vmem:[#allocation2 + $0x120] sm:$0x80]
        %v782 = vld [vmem:[#allocation2 + $0x128] sm:$0x80]
        %v783 = vld [vmem:[#allocation2 + $0x130] sm:$0x7f]
        %v784 = vld [vmem:[#allocation2 + $0x138] sm:$0x7f]
        %v785 = vld [vmem:[#allocation2 + $0x150] sm:$0x80]
        %v786 = vld [vmem:[#allocation2 + $0x158] sm:$0x80]
        %v787 = vld [vmem:[#allocation2 + $0x160] sm:$0x7f]
        %v788 = vld [vmem:[#allocation2 + $0x168] sm:$0x7f]
        %v789 = vld [vmem:[#allocation2 + $0x180] sm:$0x80]
        %v790 = vld [vmem:[#allocation2 + $0x188] sm:$0x80]
        %v791 = vld [vmem:[#allocation2 + $0x190] sm:$0x7f]
        %v792 = vld [vmem:[#allocation2 + $0x198] sm:$0x7f]
        %v793 = vld [vmem:[#allocation2 + $0x1b0] sm:$0x80]
        %v794 = vld [vmem:[#allocation2 + $0x1b8] sm:$0x80]
        %v795 = vld [vmem:[#allocation2 + $0x1c0] sm:$0x7f]
        %v796 = vld [vmem:[#allocation2 + $0x1c8] sm:$0x7f]
        %v797 = vld [vmem:[%s433] ss:$8 sm:$0x3]
        %v799 = vlaneseq
        %v800 = vshrl.u32 %v799, 7
        %v801 = vsub.s32 0, %v800
        %v802 = vrot.slane %v797, %v801
        %v803 = vlaneseq
        %v804 = vshrl.u32 %v803, 7
        %v805 = vsub.s32 1, %v804
        %v806 = vrot.slane %v797, %v805
        %v809 = vmul.f32 %v757, %v802
        %v810 = vmul.f32 %v758, %v806
        %v811 = vmul.f32 %v759, %v802
        %v812 = vmul.f32 %v760, %v806
        %v813 = vmul.f32 %v761, %v802
        %v814 = vmul.f32 %v762, %v806
        %v815 = vmul.f32 %v763, %v802
        %v816 = vmul.f32 %v764, %v806
        %v817 = vmul.f32 %v765, %v802
        %v818 = vmul.f32 %v766, %v806
        %v819 = vmul.f32 %v767, %v802
        %v820 = vmul.f32 %v768, %v806
        %v821 = vmul.f32 %v769, %v802
        %v822 = vmul.f32 %v770, %v806
        %v823 = vmul.f32 %v771, %v802
        %v824 = vmul.f32 %v772, %v806
        %v825 = vmul.f32 %v773, %v802
        %v826 = vmul.f32 %v774, %v806
        %v827 = vmul.f32 %v775, %v802
        %v828 = vmul.f32 %v776, %v806
        %v829 = vmul.f32 %v777, %v802
        %v830 = vmul.f32 %v778, %v806
        %v831 = vmul.f32 %v779, %v802
        %v832 = vmul.f32 %v780, %v806
        %v833 = vmul.f32 %v781, %v802
        %v834 = vmul.f32 %v782, %v806
        %v835 = vmul.f32 %v783, %v802
        %v836 = vmul.f32 %v784, %v806
        %v837 = vmul.f32 %v785, %v802
        %v838 = vmul.f32 %v786, %v806
        %v839 = vmul.f32 %v787, %v802
        %v840 = vmul.f32 %v788, %v806
        %v841 = vadd.f32 %v809, 0.0
        %v842 = vadd.f32 %v810, 0.0
        %v843 = vadd.f32 %v811, 0.0
        %v844 = vadd.f32 %v812, 0.0
        %v845 = vadd.f32 %v813, 0.0
        %v846 = vadd.f32 %v814, 0.0
        %v847 = vadd.f32 %v815, 0.0
        %v848 = vadd.f32 %v816, 0.0
        %v849 = vadd.f32 %v817, 0.0
        %v850 = vadd.f32 %v818, 0.0
        %v851 = vadd.f32 %v819, 0.0
        %v852 = vadd.f32 %v820, 0.0
        %v853 = vadd.f32 %v821, 0.0
        %v854 = vadd.f32 %v822, 0.0
        %v855 = vadd.f32 %v823, 0.0
        %v856 = vadd.f32 %v824, 0.0
        %v857 = vadd.f32 %v825, 0.0
        %v858 = vadd.f32 %v826, 0.0
        %v859 = vadd.f32 %v827, 0.0
        %v860 = vadd.f32 %v828, 0.0
        %v861 = vadd.f32 %v829, 0.0
        %v862 = vadd.f32 %v830, 0.0
        %v863 = vadd.f32 %v831, 0.0
        %v864 = vadd.f32 %v832, 0.0
        %v865 = vadd.f32 %v833, 0.0
        %v866 = vadd.f32 %v834, 0.0
        %v867 = vadd.f32 %v835, 0.0
        %v868 = vadd.f32 %v836, 0.0
        %v869 = vadd.f32 %v837, 0.0
        %v870 = vadd.f32 %v838, 0.0
        %v871 = vadd.f32 %v839, 0.0
        %v872 = vadd.f32 %v840, 0.0
        %s873 = scalar_lea.vmem %s433, 3 [#allocation10]
        %v874 = vld [vmem:[%s873] ss:$8 sm:$0x3]
        %v876 = vlaneseq
        %v877 = vshrl.u32 %v876, 7
        %v878 = vsub.s32 0, %v877
        %v879 = vrot.slane %v874, %v878
        %v880 = vlaneseq
        %v881 = vshrl.u32 %v880, 7
        %v882 = vsub.s32 1, %v881
        %v883 = vrot.slane %v874, %v882
        %v886 = vmul.f32 %v761, %v879
        %v887 = vmul.f32 %v762, %v883
        %v888 = vmul.f32 %v763, %v879
        %v889 = vmul.f32 %v764, %v883
        %v890 = vmul.f32 %v765, %v879
        %v891 = vmul.f32 %v766, %v883
        %v892 = vmul.f32 %v767, %v879
        %v893 = vmul.f32 %v768, %v883
        %v894 = vmul.f32 %v769, %v879
        %v895 = vmul.f32 %v770, %v883
        %v896 = vmul.f32 %v771, %v879
        %v897 = vmul.f32 %v772, %v883
        %v898 = vmul.f32 %v773, %v879
        %v899 = vmul.f32 %v774, %v883
        %v900 = vmul.f32 %v775, %v879
        %v901 = vmul.f32 %v776, %v883
        %v902 = vmul.f32 %v777, %v879
        %v903 = vmul.f32 %v778, %v883
        %v904 = vmul.f32 %v779, %v879
        %v905 = vmul.f32 %v780, %v883
        %v906 = vmul.f32 %v781, %v879
        %v907 = vmul.f32 %v782, %v883
        %v908 = vmul.f32 %v783, %v879
        %v909 = vmul.f32 %v784, %v883
        %v910 = vmul.f32 %v785, %v879
        %v911 = vmul.f32 %v786, %v883
        %v912 = vmul.f32 %v787, %v879
        %v913 = vmul.f32 %v788, %v883
        %v914 = vmul.f32 %v789, %v879
        %v915 = vmul.f32 %v790, %v883
        %v916 = vmul.f32 %v791, %v879
        %v917 = vmul.f32 %v792, %v883
        %v918 = vadd.f32 %v841, %v886
        %v919 = vadd.f32 %v842, %v887
        %v920 = vadd.f32 %v843, %v888
        %v921 = vadd.f32 %v844, %v889
        %v922 = vadd.f32 %v845, %v890
        %v923 = vadd.f32 %v846, %v891
        %v924 = vadd.f32 %v847, %v892
        %v925 = vadd.f32 %v848, %v893
        %v926 = vadd.f32 %v849, %v894
        %v927 = vadd.f32 %v850, %v895
        %v928 = vadd.f32 %v851, %v896
        %v929 = vadd.f32 %v852, %v897
        %v930 = vadd.f32 %v853, %v898
        %v931 = vadd.f32 %v854, %v899
        %v932 = vadd.f32 %v855, %v900
        %v933 = vadd.f32 %v856, %v901
        %v934 = vadd.f32 %v857, %v902
        %v935 = vadd.f32 %v858, %v903
        %v936 = vadd.f32 %v859, %v904
        %v937 = vadd.f32 %v860, %v905
        %v938 = vadd.f32 %v861, %v906
        %v939 = vadd.f32 %v862, %v907
        %v940 = vadd.f32 %v863, %v908
        %v941 = vadd.f32 %v864, %v909
        %v942 = vadd.f32 %v865, %v910
        %v943 = vadd.f32 %v866, %v911
        %v944 = vadd.f32 %v867, %v912
        %v945 = vadd.f32 %v868, %v913
        %v946 = vadd.f32 %v869, %v914
        %v947 = vadd.f32 %v870, %v915
        %v948 = vadd.f32 %v871, %v916
        %v949 = vadd.f32 %v872, %v917
        %s950 = scalar_lea.vmem %s433, 6 [#allocation10]
        %v951 = vld [vmem:[%s950] ss:$8 sm:$0x3]
        %v953 = vlaneseq
        %v954 = vshrl.u32 %v953, 7
        %v955 = vsub.s32 0, %v954
        %v956 = vrot.slane %v951, %v955
        %v957 = vlaneseq
        %v958 = vshrl.u32 %v957, 7
        %v959 = vsub.s32 1, %v958
        %v960 = vrot.slane %v951, %v959
        %v963 = vmul.f32 %v765, %v956
        %v964 = vmul.f32 %v766, %v960
        %v965 = vmul.f32 %v767, %v956
        %v966 = vmul.f32 %v768, %v960
        %v967 = vmul.f32 %v769, %v956
        %v968 = vmul.f32 %v770, %v960
        %v969 = vmul.f32 %v771, %v956
        %v970 = vmul.f32 %v772, %v960
        %v971 = vmul.f32 %v773, %v956
        %v972 = vmul.f32 %v774, %v960
        %v973 = vmul.f32 %v775, %v956
        %v974 = vmul.f32 %v776, %v960
        %v975 = vmul.f32 %v777, %v956
        %v976 = vmul.f32 %v778, %v960
        %v977 = vmul.f32 %v779, %v956
        %v978 = vmul.f32 %v780, %v960
        %v979 = vmul.f32 %v781, %v956
        %v980 = vmul.f32 %v782, %v960
        %v981 = vmul.f32 %v783, %v956
        %v982 = vmul.f32 %v784, %v960
        %v983 = vmul.f32 %v785, %v956
        %v984 = vmul.f32 %v786, %v960
        %v985 = vmul.f32 %v787, %v956
        %v986 = vmul.f32 %v788, %v960
        %v987 = vmul.f32 %v789, %v956
        %v988 = vmul.f32 %v790, %v960
        %v989 = vmul.f32 %v791, %v956
        %v990 = vmul.f32 %v792, %v960
        %v991 = vmul.f32 %v793, %v956
        %v992 = vmul.f32 %v794, %v960
        %v993 = vmul.f32 %v795, %v956
        %v994 = vmul.f32 %v796, %v960
        %v995 = vadd.f32 %v918, %v963
        %v996 = vadd.f32 %v919, %v964
        %v997 = vadd.f32 %v920, %v965
        %v998 = vadd.f32 %v921, %v966
        %v999 = vadd.f32 %v922, %v967
        %v1000 = vadd.f32 %v923, %v968
        %v1001 = vadd.f32 %v924, %v969
        %v1002 = vadd.f32 %v925, %v970
        %v1003 = vadd.f32 %v926, %v971
        %v1004 = vadd.f32 %v927, %v972
        %v1005 = vadd.f32 %v928, %v973
        %v1006 = vadd.f32 %v929, %v974
        %v1007 = vadd.f32 %v930, %v975
        %v1008 = vadd.f32 %v931, %v976
        %v1009 = vadd.f32 %v932, %v977
        %v1010 = vadd.f32 %v933, %v978
        %v1011 = vadd.f32 %v934, %v979
        %v1012 = vadd.f32 %v935, %v980
        %v1013 = vadd.f32 %v936, %v981
        %v1014 = vadd.f32 %v937, %v982
        %v1015 = vadd.f32 %v938, %v983
        %v1016 = vadd.f32 %v939, %v984
        %v1017 = vadd.f32 %v940, %v985
        %v1018 = vadd.f32 %v941, %v986
        %v1019 = vadd.f32 %v942, %v987
        %v1020 = vadd.f32 %v943, %v988
        %v1021 = vadd.f32 %v944, %v989
        %v1022 = vadd.f32 %v945, %v990
        %v1023 = vadd.f32 %v946, %v991
        %v1024 = vadd.f32 %v947, %v992
        %v1025 = vadd.f32 %v948, %v993
        %v1026 = vadd.f32 %v949, %v994
        %v1027 = vld [vmem:[#allocation2 + $0x10] sm:$0xff]
        %v1028 = vld [vmem:[#allocation2 + $0x18] sm:$0xff]
        %v1029 = vld [vmem:[#allocation2 + $0x40] sm:$0xff]
        %v1030 = vld [vmem:[#allocation2 + $0x48] sm:$0xff]
        %v1031 = vld [vmem:[#allocation2 + $0x70] sm:$0xff]
        %v1032 = vld [vmem:[#allocation2 + $0x78] sm:$0xff]
        %v1033 = vld [vmem:[#allocation2 + $0xa0] sm:$0xff]
        %v1034 = vld [vmem:[#allocation2 + $0xa8] sm:$0xff]
        %v1035 = vld [vmem:[#allocation2 + $0xd0] sm:$0xff]
        %v1036 = vld [vmem:[#allocation2 + $0xd8] sm:$0xff]
        %v1037 = vld [vmem:[#allocation2 + $0x100] sm:$0xff]
        %v1038 = vld [vmem:[#allocation2 + $0x108] sm:$0xff]
        %v1039 = vld [vmem:[#allocation2 + $0x130] sm:$0xff]
        %v1040 = vld [vmem:[#allocation2 + $0x138] sm:$0xff]
        %v1041 = vld [vmem:[#allocation2 + $0x160] sm:$0xff]
        %v1042 = vld [vmem:[#allocation2 + $0x168] sm:$0xff]
        %v1043 = vld [vmem:[#allocation2 + $0x190] sm:$0xff]
        %v1044 = vld [vmem:[#allocation2 + $0x198] sm:$0xff]
        %v1045 = vld [vmem:[#allocation2 + $0x1c0] sm:$0xff]
        %v1046 = vld [vmem:[#allocation2 + $0x1c8] sm:$0xff]
        %s1047 = scalar_lea.vmem %s433, 1 [#allocation10]
        %v1048 = vld [vmem:[%s1047] ss:$8 sm:$0x3]
        %v1050 = vlaneseq
        %v1051 = vshrl.u32 %v1050, 7
        %v1052 = vsub.s32 0, %v1051
        %v1053 = vrot.slane %v1048, %v1052
        %v1054 = vlaneseq
        %v1055 = vshrl.u32 %v1054, 7
        %v1056 = vsub.s32 1, %v1055
        %v1057 = vrot.slane %v1048, %v1056
        %v1060 = vmul.f32 %v1027, %v1053
        %v1061 = vmul.f32 %v1028, %v1057
        %v1062 = vmul.f32 %v1029, %v1053
        %v1063 = vmul.f32 %v1030, %v1057
        %v1064 = vmul.f32 %v1031, %v1053
        %v1065 = vmul.f32 %v1032, %v1057
        %v1066 = vmul.f32 %v1033, %v1053
        %v1067 = vmul.f32 %v1034, %v1057
        %v1068 = vmul.f32 %v1035, %v1053
        %v1069 = vmul.f32 %v1036, %v1057
        %v1070 = vmul.f32 %v1037, %v1053
        %v1071 = vmul.f32 %v1038, %v1057
        %v1072 = vmul.f32 %v1039, %v1053
        %v1073 = vmul.f32 %v1040, %v1057
        %v1074 = vmul.f32 %v1041, %v1053
        %v1075 = vmul.f32 %v1042, %v1057
        %v1092 = vrot.slane %v1060, 1
        %v1093 = vrot.slane %v1061, 1
        %v1094 = vrot.slane %v1062, 1
        %v1095 = vrot.slane %v1063, 1
        %v1096 = vrot.slane %v1064, 1
        %v1097 = vrot.slane %v1065, 1
        %v1098 = vrot.slane %v1066, 1
        %v1099 = vrot.slane %v1067, 1
        %v1100 = vrot.slane %v1068, 1
        %v1101 = vrot.slane %v1069, 1
        %v1102 = vrot.slane %v1070, 1
        %v1103 = vrot.slane %v1071, 1
        %v1104 = vrot.slane %v1072, 1
        %v1105 = vrot.slane %v1073, 1
        %v1106 = vrot.slane %v1074, 1
        %v1107 = vrot.slane %v1075, 1
        %v1124 = vadd.f32 %v995, %v1092
        %v1125 = vadd.f32 %v996, %v1093
        %v1126 = vadd.f32 %v997, %v1092
        %v1127 = vadd.f32 %v998, %v1093
        %v1128 = vadd.f32 %v999, %v1094
        %v1129 = vadd.f32 %v1000, %v1095
        %v1130 = vadd.f32 %v1001, %v1094
        %v1131 = vadd.f32 %v1002, %v1095
        %v1132 = vadd.f32 %v1003, %v1096
        %v1133 = vadd.f32 %v1004, %v1097
        %v1134 = vadd.f32 %v1005, %v1096
        %v1135 = vadd.f32 %v1006, %v1097
        %v1136 = vadd.f32 %v1007, %v1098
        %v1137 = vadd.f32 %v1008, %v1099
        %v1138 = vadd.f32 %v1009, %v1098
        %v1139 = vadd.f32 %v1010, %v1099
        %v1140 = vadd.f32 %v1011, %v1100
        %v1141 = vadd.f32 %v1012, %v1101
        %v1142 = vadd.f32 %v1013, %v1100
        %v1143 = vadd.f32 %v1014, %v1101
        %v1144 = vadd.f32 %v1015, %v1102
        %v1145 = vadd.f32 %v1016, %v1103
        %v1146 = vadd.f32 %v1017, %v1102
        %v1147 = vadd.f32 %v1018, %v1103
        %v1148 = vadd.f32 %v1019, %v1104
        %v1149 = vadd.f32 %v1020, %v1105
        %v1150 = vadd.f32 %v1021, %v1104
        %v1151 = vadd.f32 %v1022, %v1105
        %v1152 = vadd.f32 %v1023, %v1106
        %v1153 = vadd.f32 %v1024, %v1107
        %v1154 = vadd.f32 %v1025, %v1106
        %v1155 = vadd.f32 %v1026, %v1107
        %s1156 = scalar_lea.vmem %s433, 4 [#allocation10]
        %v1157 = vld [vmem:[%s1156] ss:$8 sm:$0x3]
        %v1159 = vlaneseq
        %v1160 = vshrl.u32 %v1159, 7
        %v1161 = vsub.s32 0, %v1160
        %v1162 = vrot.slane %v1157, %v1161
        %v1163 = vlaneseq
        %v1164 = vshrl.u32 %v1163, 7
        %v1165 = vsub.s32 1, %v1164
        %v1166 = vrot.slane %v1157, %v1165
        %v1169 = vmul.f32 %v1029, %v1162
        %v1170 = vmul.f32 %v1030, %v1166
        %v1171 = vmul.f32 %v1031, %v1162
        %v1172 = vmul.f32 %v1032, %v1166
        %v1173 = vmul.f32 %v1033, %v1162
        %v1174 = vmul.f32 %v1034, %v1166
        %v1175 = vmul.f32 %v1035, %v1162
        %v1176 = vmul.f32 %v1036, %v1166
        %v1177 = vmul.f32 %v1037, %v1162
        %v1178 = vmul.f32 %v1038, %v1166
        %v1179 = vmul.f32 %v1039, %v1162
        %v1180 = vmul.f32 %v1040, %v1166
        %v1181 = vmul.f32 %v1041, %v1162
        %v1182 = vmul.f32 %v1042, %v1166
        %v1183 = vmul.f32 %v1043, %v1162
        %v1184 = vmul.f32 %v1044, %v1166
        %v1201 = vrot.slane %v1169, 1
        %v1202 = vrot.slane %v1170, 1
        %v1203 = vrot.slane %v1171, 1
        %v1204 = vrot.slane %v1172, 1
        %v1205 = vrot.slane %v1173, 1
        %v1206 = vrot.slane %v1174, 1
        %v1207 = vrot.slane %v1175, 1
        %v1208 = vrot.slane %v1176, 1
        %v1209 = vrot.slane %v1177, 1
        %v1210 = vrot.slane %v1178, 1
        %v1211 = vrot.slane %v1179, 1
        %v1212 = vrot.slane %v1180, 1
        %v1213 = vrot.slane %v1181, 1
        %v1214 = vrot.slane %v1182, 1
        %v1215 = vrot.slane %v1183, 1
        %v1216 = vrot.slane %v1184, 1
        %v1233 = vadd.f32 %v1124, %v1201
        %v1234 = vadd.f32 %v1125, %v1202
        %v1235 = vadd.f32 %v1126, %v1201
        %v1236 = vadd.f32 %v1127, %v1202
        %v1237 = vadd.f32 %v1128, %v1203
        %v1238 = vadd.f32 %v1129, %v1204
        %v1239 = vadd.f32 %v1130, %v1203
        %v1240 = vadd.f32 %v1131, %v1204
        %v1241 = vadd.f32 %v1132, %v1205
        %v1242 = vadd.f32 %v1133, %v1206
        %v1243 = vadd.f32 %v1134, %v1205
        %v1244 = vadd.f32 %v1135, %v1206
        %v1245 = vadd.f32 %v1136, %v1207
        %v1246 = vadd.f32 %v1137, %v1208
        %v1247 = vadd.f32 %v1138, %v1207
        %v1248 = vadd.f32 %v1139, %v1208
        %v1249 = vadd.f32 %v1140, %v1209
        %v1250 = vadd.f32 %v1141, %v1210
        %v1251 = vadd.f32 %v1142, %v1209
        %v1252 = vadd.f32 %v1143, %v1210
        %v1253 = vadd.f32 %v1144, %v1211
        %v1254 = vadd.f32 %v1145, %v1212
        %v1255 = vadd.f32 %v1146, %v1211
        %v1256 = vadd.f32 %v1147, %v1212
        %v1257 = vadd.f32 %v1148, %v1213
        %v1258 = vadd.f32 %v1149, %v1214
        %v1259 = vadd.f32 %v1150, %v1213
        %v1260 = vadd.f32 %v1151, %v1214
        %v1261 = vadd.f32 %v1152, %v1215
        %v1262 = vadd.f32 %v1153, %v1216
        %v1263 = vadd.f32 %v1154, %v1215
        %v1264 = vadd.f32 %v1155, %v1216
        %s1265 = scalar_lea.vmem %s433, 7 [#allocation10]
        %v1266 = vld [vmem:[%s1265] ss:$8 sm:$0x3]
        %v1268 = vlaneseq
        %v1269 = vshrl.u32 %v1268, 7
        %v1270 = vsub.s32 0, %v1269
        %v1271 = vrot.slane %v1266, %v1270
        %v1272 = vlaneseq
        %v1273 = vshrl.u32 %v1272, 7
        %v1274 = vsub.s32 1, %v1273
        %v1275 = vrot.slane %v1266, %v1274
        %v1278 = vmul.f32 %v1031, %v1271
        %v1279 = vmul.f32 %v1032, %v1275
        %v1280 = vmul.f32 %v1033, %v1271
        %v1281 = vmul.f32 %v1034, %v1275
        %v1282 = vmul.f32 %v1035, %v1271
        %v1283 = vmul.f32 %v1036, %v1275
        %v1284 = vmul.f32 %v1037, %v1271
        %v1285 = vmul.f32 %v1038, %v1275
        %v1286 = vmul.f32 %v1039, %v1271
        %v1287 = vmul.f32 %v1040, %v1275
        %v1288 = vmul.f32 %v1041, %v1271
        %v1289 = vmul.f32 %v1042, %v1275
        %v1290 = vmul.f32 %v1043, %v1271
        %v1291 = vmul.f32 %v1044, %v1275
        %v1292 = vmul.f32 %v1045, %v1271
        %v1293 = vmul.f32 %v1046, %v1275
        %v1310 = vrot.slane %v1278, 1
        %v1311 = vrot.slane %v1279, 1
        %v1312 = vrot.slane %v1280, 1
        %v1313 = vrot.slane %v1281, 1
        %v1314 = vrot.slane %v1282, 1
        %v1315 = vrot.slane %v1283, 1
        %v1316 = vrot.slane %v1284, 1
        %v1317 = vrot.slane %v1285, 1
        %v1318 = vrot.slane %v1286, 1
        %v1319 = vrot.slane %v1287, 1
        %v1320 = vrot.slane %v1288, 1
        %v1321 = vrot.slane %v1289, 1
        %v1322 = vrot.slane %v1290, 1
        %v1323 = vrot.slane %v1291, 1
        %v1324 = vrot.slane %v1292, 1
        %v1325 = vrot.slane %v1293, 1
        %v1342 = vadd.f32 %v1233, %v1310
        %v1343 = vadd.f32 %v1234, %v1311
        %v1344 = vadd.f32 %v1235, %v1310
        %v1345 = vadd.f32 %v1236, %v1311
        %v1346 = vadd.f32 %v1237, %v1312
        %v1347 = vadd.f32 %v1238, %v1313
        %v1348 = vadd.f32 %v1239, %v1312
        %v1349 = vadd.f32 %v1240, %v1313
        %v1350 = vadd.f32 %v1241, %v1314
        %v1351 = vadd.f32 %v1242, %v1315
        %v1352 = vadd.f32 %v1243, %v1314
        %v1353 = vadd.f32 %v1244, %v1315
        %v1354 = vadd.f32 %v1245, %v1316
        %v1355 = vadd.f32 %v1246, %v1317
        %v1356 = vadd.f32 %v1247, %v1316
        %v1357 = vadd.f32 %v1248, %v1317
        %v1358 = vadd.f32 %v1249, %v1318
        %v1359 = vadd.f32 %v1250, %v1319
        %v1360 = vadd.f32 %v1251, %v1318
        %v1361 = vadd.f32 %v1252, %v1319
        %v1362 = vadd.f32 %v1253, %v1320
        %v1363 = vadd.f32 %v1254, %v1321
        %v1364 = vadd.f32 %v1255, %v1320
        %v1365 = vadd.f32 %v1256, %v1321
        %v1366 = vadd.f32 %v1257, %v1322
        %v1367 = vadd.f32 %v1258, %v1323
        %v1368 = vadd.f32 %v1259, %v1322
        %v1369 = vadd.f32 %v1260, %v1323
        %v1370 = vadd.f32 %v1261, %v1324
        %v1371 = vadd.f32 %v1262, %v1325
        %v1372 = vadd.f32 %v1263, %v1324
        %v1373 = vadd.f32 %v1264, %v1325
        %v1374 = vld [vmem:[#allocation2 + $0x10] sm:$0xfe]
        %v1375 = vld [vmem:[#allocation2 + $0x18] sm:$0xfe]
        %v1376 = vld [vmem:[#allocation2 + $0x20] sm:$0x1]
        %v1377 = vld [vmem:[#allocation2 + $0x28] sm:$0x1]
        %v1378 = vld [vmem:[#allocation2 + $0x40] sm:$0xfe]
        %v1379 = vld [vmem:[#allocation2 + $0x48] sm:$0xfe]
        %v1380 = vld [vmem:[#allocation2 + $0x50] sm:$0x1]
        %v1381 = vld [vmem:[#allocation2 + $0x58] sm:$0x1]
        %v1382 = vld [vmem:[#allocation2 + $0x70] sm:$0xfe]
        %v1383 = vld [vmem:[#allocation2 + $0x78] sm:$0xfe]
        %v1384 = vld [vmem:[#allocation2 + $0x80] sm:$0x1]
        %v1385 = vld [vmem:[#allocation2 + $0x88] sm:$0x1]
        %v1386 = vld [vmem:[#allocation2 + $0xa0] sm:$0xfe]
        %v1387 = vld [vmem:[#allocation2 + $0xa8] sm:$0xfe]
        %v1388 = vld [vmem:[#allocation2 + $0xb0] sm:$0x1]
        %v1389 = vld [vmem:[#allocation2 + $0xb8] sm:$0x1]
        %v1390 = vld [vmem:[#allocation2 + $0xd0] sm:$0xfe]
        %v1391 = vld [vmem:[#allocation2 + $0xd8] sm:$0xfe]
        %v1392 = vld [vmem:[#allocation2 + $0xe0] sm:$0x1]
        %v1393 = vld [vmem:[#allocation2 + $0xe8] sm:$0x1]
        %v1394 = vld [vmem:[#allocation2 + $0x100] sm:$0xfe]
        %v1395 = vld [vmem:[#allocation2 + $0x108] sm:$0xfe]
        %v1396 = vld [vmem:[#allocation2 + $0x110] sm:$0x1]
        %v1397 = vld [vmem:[#allocation2 + $0x118] sm:$0x1]
        %v1398 = vld [vmem:[#allocation2 + $0x130] sm:$0xfe]
        %v1399 = vld [vmem:[#allocation2 + $0x138] sm:$0xfe]
        %v1400 = vld [vmem:[#allocation2 + $0x140] sm:$0x1]
        %v1401 = vld [vmem:[#allocation2 + $0x148] sm:$0x1]
        %v1402 = vld [vmem:[#allocation2 + $0x160] sm:$0xfe]
        %v1403 = vld [vmem:[#allocation2 + $0x168] sm:$0xfe]
        %v1404 = vld [vmem:[#allocation2 + $0x170] sm:$0x1]
        %v1405 = vld [vmem:[#allocation2 + $0x178] sm:$0x1]
        %v1406 = vld [vmem:[#allocation2 + $0x190] sm:$0xfe]
        %v1407 = vld [vmem:[#allocation2 + $0x198] sm:$0xfe]
        %v1408 = vld [vmem:[#allocation2 + $0x1a0] sm:$0x1]
        %v1409 = vld [vmem:[#allocation2 + $0x1a8] sm:$0x1]
        %v1410 = vld [vmem:[#allocation2 + $0x1c0] sm:$0xfe]
        %v1411 = vld [vmem:[#allocation2 + $0x1c8] sm:$0xfe]
        %v1412 = vld [vmem:[#allocation2 + $0x1d0] sm:$0x1]
        %v1413 = vld [vmem:[#allocation2 + $0x1d8] sm:$0x1]
        %s1414 = scalar_lea.vmem %s433, 2 [#allocation10]
        %v1415 = vld [vmem:[%s1414] ss:$8 sm:$0x3]
        %v1417 = vlaneseq
        %v1418 = vshrl.u32 %v1417, 7
        %v1419 = vsub.s32 0, %v1418
        %v1420 = vrot.slane %v1415, %v1419
        %v1421 = vlaneseq
        %v1422 = vshrl.u32 %v1421, 7
        %v1423 = vsub.s32 1, %v1422
        %v1424 = vrot.slane %v1415, %v1423
        %v1427 = vmul.f32 %v1374, %v1420
        %v1428 = vmul.f32 %v1375, %v1424
        %v1429 = vmul.f32 %v1376, %v1420
        %v1430 = vmul.f32 %v1377, %v1424
        %v1431 = vmul.f32 %v1378, %v1420
        %v1432 = vmul.f32 %v1379, %v1424
        %v1433 = vmul.f32 %v1380, %v1420
        %v1434 = vmul.f32 %v1381, %v1424
        %v1435 = vmul.f32 %v1382, %v1420
        %v1436 = vmul.f32 %v1383, %v1424
        %v1437 = vmul.f32 %v1384, %v1420
        %v1438 = vmul.f32 %v1385, %v1424
        %v1439 = vmul.f32 %v1386, %v1420
        %v1440 = vmul.f32 %v1387, %v1424
        %v1441 = vmul.f32 %v1388, %v1420
        %v1442 = vmul.f32 %v1389, %v1424
        %v1443 = vmul.f32 %v1390, %v1420
        %v1444 = vmul.f32 %v1391, %v1424
        %v1445 = vmul.f32 %v1392, %v1420
        %v1446 = vmul.f32 %v1393, %v1424
        %v1447 = vmul.f32 %v1394, %v1420
        %v1448 = vmul.f32 %v1395, %v1424
        %v1449 = vmul.f32 %v1396, %v1420
        %v1450 = vmul.f32 %v1397, %v1424
        %v1451 = vmul.f32 %v1398, %v1420
        %v1452 = vmul.f32 %v1399, %v1424
        %v1453 = vmul.f32 %v1400, %v1420
        %v1454 = vmul.f32 %v1401, %v1424
        %v1455 = vmul.f32 %v1402, %v1420
        %v1456 = vmul.f32 %v1403, %v1424
        %v1457 = vmul.f32 %v1404, %v1420
        %v1458 = vmul.f32 %v1405, %v1424
        %vm1491 = vcmask 1045504
        %v1492 = vrot.slane %v1427, 2
        %v1493 = vrot.slane %v1428, 2
        %v1494 = vrot.slane %v1429, 2
        %v1495 = vsel %vm1491, %v1492, %v1494
        %v1496 = vrot.slane %v1430, 2
        %v1497 = vsel %vm1491, %v1493, %v1496
        %v1498 = vrot.slane %v1431, 2
        %v1499 = vrot.slane %v1432, 2
        %v1500 = vrot.slane %v1433, 2
        %v1501 = vsel %vm1491, %v1498, %v1500
        %v1502 = vrot.slane %v1434, 2
        %v1503 = vsel %vm1491, %v1499, %v1502
        %v1504 = vrot.slane %v1435, 2
        %v1505 = vrot.slane %v1436, 2
        %v1506 = vrot.slane %v1437, 2
        %v1507 = vsel %vm1491, %v1504, %v1506
        %v1508 = vrot.slane %v1438, 2
        %v1509 = vsel %vm1491, %v1505, %v1508
        %v1510 = vrot.slane %v1439, 2
        %v1511 = vrot.slane %v1440, 2
        %v1512 = vrot.slane %v1441, 2
        %v1513 = vsel %vm1491, %v1510, %v1512
        %v1514 = vrot.slane %v1442, 2
        %v1515 = vsel %vm1491, %v1511, %v1514
        %v1516 = vrot.slane %v1443, 2
        %v1517 = vrot.slane %v1444, 2
        %v1518 = vrot.slane %v1445, 2
        %v1519 = vsel %vm1491, %v1516, %v1518
        %v1520 = vrot.slane %v1446, 2
        %v1521 = vsel %vm1491, %v1517, %v1520
        %v1522 = vrot.slane %v1447, 2
        %v1523 = vrot.slane %v1448, 2
        %v1524 = vrot.slane %v1449, 2
        %v1525 = vsel %vm1491, %v1522, %v1524
        %v1526 = vrot.slane %v1450, 2
        %v1527 = vsel %vm1491, %v1523, %v1526
        %v1528 = vrot.slane %v1451, 2
        %v1529 = vrot.slane %v1452, 2
        %v1530 = vrot.slane %v1453, 2
        %v1531 = vsel %vm1491, %v1528, %v1530
        %v1532 = vrot.slane %v1454, 2
        %v1533 = vsel %vm1491, %v1529, %v1532
        %v1534 = vrot.slane %v1455, 2
        %v1535 = vrot.slane %v1456, 2
        %v1536 = vrot.slane %v1457, 2
        %v1537 = vsel %vm1491, %v1534, %v1536
        %v1538 = vrot.slane %v1458, 2
        %v1539 = vsel %vm1491, %v1535, %v1538
        %v1572 = vadd.f32 %v1342, %v1492
        %v1573 = vadd.f32 %v1343, %v1493
        %v1574 = vadd.f32 %v1344, %v1495
        %v1575 = vadd.f32 %v1345, %v1497
        %v1576 = vadd.f32 %v1346, %v1498
        %v1577 = vadd.f32 %v1347, %v1499
        %v1578 = vadd.f32 %v1348, %v1501
        %v1579 = vadd.f32 %v1349, %v1503
        %v1580 = vadd.f32 %v1350, %v1504
        %v1581 = vadd.f32 %v1351, %v1505
        %v1582 = vadd.f32 %v1352, %v1507
        %v1583 = vadd.f32 %v1353, %v1509
        %v1584 = vadd.f32 %v1354, %v1510
        %v1585 = vadd.f32 %v1355, %v1511
        %v1586 = vadd.f32 %v1356, %v1513
        %v1587 = vadd.f32 %v1357, %v1515
        %v1588 = vadd.f32 %v1358, %v1516
        %v1589 = vadd.f32 %v1359, %v1517
        %v1590 = vadd.f32 %v1360, %v1519
        %v1591 = vadd.f32 %v1361, %v1521
        %v1592 = vadd.f32 %v1362, %v1522
        %v1593 = vadd.f32 %v1363, %v1523
        %v1594 = vadd.f32 %v1364, %v1525
        %v1595 = vadd.f32 %v1365, %v1527
        %v1596 = vadd.f32 %v1366, %v1528
        %v1597 = vadd.f32 %v1367, %v1529
        %v1598 = vadd.f32 %v1368, %v1531
        %v1599 = vadd.f32 %v1369, %v1533
        %v1600 = vadd.f32 %v1370, %v1534
        %v1601 = vadd.f32 %v1371, %v1535
        %v1602 = vadd.f32 %v1372, %v1537
        %v1603 = vadd.f32 %v1373, %v1539
        %s1604 = scalar_lea.vmem %s433, 5 [#allocation10]
        %v1605 = vld [vmem:[%s1604] ss:$8 sm:$0x3]
        %v1607 = vlaneseq
        %v1608 = vshrl.u32 %v1607, 7
        %v1609 = vsub.s32 0, %v1608
        %v1610 = vrot.slane %v1605, %v1609
        %v1611 = vlaneseq
        %v1612 = vshrl.u32 %v1611, 7
        %v1613 = vsub.s32 1, %v1612
        %v1614 = vrot.slane %v1605, %v1613
        %v1617 = vmul.f32 %v1378, %v1610
        %v1618 = vmul.f32 %v1379, %v1614
        %v1619 = vmul.f32 %v1380, %v1610
        %v1620 = vmul.f32 %v1381, %v1614
        %v1621 = vmul.f32 %v1382, %v1610
        %v1622 = vmul.f32 %v1383, %v1614
        %v1623 = vmul.f32 %v1384, %v1610
        %v1624 = vmul.f32 %v1385, %v1614
        %v1625 = vmul.f32 %v1386, %v1610
        %v1626 = vmul.f32 %v1387, %v1614
        %v1627 = vmul.f32 %v1388, %v1610
        %v1628 = vmul.f32 %v1389, %v1614
        %v1629 = vmul.f32 %v1390, %v1610
        %v1630 = vmul.f32 %v1391, %v1614
        %v1631 = vmul.f32 %v1392, %v1610
        %v1632 = vmul.f32 %v1393, %v1614
        %v1633 = vmul.f32 %v1394, %v1610
        %v1634 = vmul.f32 %v1395, %v1614
        %v1635 = vmul.f32 %v1396, %v1610
        %v1636 = vmul.f32 %v1397, %v1614
        %v1637 = vmul.f32 %v1398, %v1610
        %v1638 = vmul.f32 %v1399, %v1614
        %v1639 = vmul.f32 %v1400, %v1610
        %v1640 = vmul.f32 %v1401, %v1614
        %v1641 = vmul.f32 %v1402, %v1610
        %v1642 = vmul.f32 %v1403, %v1614
        %v1643 = vmul.f32 %v1404, %v1610
        %v1644 = vmul.f32 %v1405, %v1614
        %v1645 = vmul.f32 %v1406, %v1610
        %v1646 = vmul.f32 %v1407, %v1614
        %v1647 = vmul.f32 %v1408, %v1610
        %v1648 = vmul.f32 %v1409, %v1614
        %v1681 = vrot.slane %v1617, 2
        %v1682 = vrot.slane %v1618, 2
        %v1683 = vrot.slane %v1619, 2
        %v1684 = vsel %vm1491, %v1681, %v1683
        %v1685 = vrot.slane %v1620, 2
        %v1686 = vsel %vm1491, %v1682, %v1685
        %v1687 = vrot.slane %v1621, 2
        %v1688 = vrot.slane %v1622, 2
        %v1689 = vrot.slane %v1623, 2
        %v1690 = vsel %vm1491, %v1687, %v1689
        %v1691 = vrot.slane %v1624, 2
        %v1692 = vsel %vm1491, %v1688, %v1691
        %v1693 = vrot.slane %v1625, 2
        %v1694 = vrot.slane %v1626, 2
        %v1695 = vrot.slane %v1627, 2
        %v1696 = vsel %vm1491, %v1693, %v1695
        %v1697 = vrot.slane %v1628, 2
        %v1698 = vsel %vm1491, %v1694, %v1697
        %v1699 = vrot.slane %v1629, 2
        %v1700 = vrot.slane %v1630, 2
        %v1701 = vrot.slane %v1631, 2
        %v1702 = vsel %vm1491, %v1699, %v1701
        %v1703 = vrot.slane %v1632, 2
        %v1704 = vsel %vm1491, %v1700, %v1703
        %v1705 = vrot.slane %v1633, 2
        %v1706 = vrot.slane %v1634, 2
        %v1707 = vrot.slane %v1635, 2
        %v1708 = vsel %vm1491, %v1705, %v1707
        %v1709 = vrot.slane %v1636, 2
        %v1710 = vsel %vm1491, %v1706, %v1709
        %v1711 = vrot.slane %v1637, 2
        %v1712 = vrot.slane %v1638, 2
        %v1713 = vrot.slane %v1639, 2
        %v1714 = vsel %vm1491, %v1711, %v1713
        %v1715 = vrot.slane %v1640, 2
        %v1716 = vsel %vm1491, %v1712, %v1715
        %v1717 = vrot.slane %v1641, 2
        %v1718 = vrot.slane %v1642, 2
        %v1719 = vrot.slane %v1643, 2
        %v1720 = vsel %vm1491, %v1717, %v1719
        %v1721 = vrot.slane %v1644, 2
        %v1722 = vsel %vm1491, %v1718, %v1721
        %v1723 = vrot.slane %v1645, 2
        %v1724 = vrot.slane %v1646, 2
        %v1725 = vrot.slane %v1647, 2
        %v1726 = vsel %vm1491, %v1723, %v1725
        %v1727 = vrot.slane %v1648, 2
        %v1728 = vsel %vm1491, %v1724, %v1727
        %v1761 = vadd.f32 %v1572, %v1681
        %v1762 = vadd.f32 %v1573, %v1682
        %v1763 = vadd.f32 %v1574, %v1684
        %v1764 = vadd.f32 %v1575, %v1686
        %v1765 = vadd.f32 %v1576, %v1687
        %v1766 = vadd.f32 %v1577, %v1688
        %v1767 = vadd.f32 %v1578, %v1690
        %v1768 = vadd.f32 %v1579, %v1692
        %v1769 = vadd.f32 %v1580, %v1693
        %v1770 = vadd.f32 %v1581, %v1694
        %v1771 = vadd.f32 %v1582, %v1696
        %v1772 = vadd.f32 %v1583, %v1698
        %v1773 = vadd.f32 %v1584, %v1699
        %v1774 = vadd.f32 %v1585, %v1700
        %v1775 = vadd.f32 %v1586, %v1702
        %v1776 = vadd.f32 %v1587, %v1704
        %v1777 = vadd.f32 %v1588, %v1705
        %v1778 = vadd.f32 %v1589, %v1706
        %v1779 = vadd.f32 %v1590, %v1708
        %v1780 = vadd.f32 %v1591, %v1710
        %v1781 = vadd.f32 %v1592, %v1711
        %v1782 = vadd.f32 %v1593, %v1712
        %v1783 = vadd.f32 %v1594, %v1714
        %v1784 = vadd.f32 %v1595, %v1716
        %v1785 = vadd.f32 %v1596, %v1717
        %v1786 = vadd.f32 %v1597, %v1718
        %v1787 = vadd.f32 %v1598, %v1720
        %v1788 = vadd.f32 %v1599, %v1722
        %v1789 = vadd.f32 %v1600, %v1723
        %v1790 = vadd.f32 %v1601, %v1724
        %v1791 = vadd.f32 %v1602, %v1726
        %v1792 = vadd.f32 %v1603, %v1728
        %s1793 = scalar_lea.vmem %s433, 16 [#allocation10]
        %v1794 = vld [vmem:[%s1793] ss:$8 sm:$0x3]
        %v1796 = vlaneseq
        %v1797 = vshrl.u32 %v1796, 7
        %v1798 = vsub.s32 0, %v1797
        %v1799 = vrot.slane %v1794, %v1798
        %v1800 = vlaneseq
        %v1801 = vshrl.u32 %v1800, 7
        %v1802 = vsub.s32 1, %v1801
        %v1803 = vrot.slane %v1794, %v1802
        %v1806 = vmul.f32 %v1382, %v1799
        %v1807 = vmul.f32 %v1383, %v1803
        %v1808 = vmul.f32 %v1384, %v1799
        %v1809 = vmul.f32 %v1385, %v1803
        %v1810 = vmul.f32 %v1386, %v1799
        %v1811 = vmul.f32 %v1387, %v1803
        %v1812 = vmul.f32 %v1388, %v1799
        %v1813 = vmul.f32 %v1389, %v1803
        %v1814 = vmul.f32 %v1390, %v1799
        %v1815 = vmul.f32 %v1391, %v1803
        %v1816 = vmul.f32 %v1392, %v1799
        %v1817 = vmul.f32 %v1393, %v1803
        %v1818 = vmul.f32 %v1394, %v1799
        %v1819 = vmul.f32 %v1395, %v1803
        %v1820 = vmul.f32 %v1396, %v1799
        %v1821 = vmul.f32 %v1397, %v1803
        %v1822 = vmul.f32 %v1398, %v1799
        %v1823 = vmul.f32 %v1399, %v1803
        %v1824 = vmul.f32 %v1400, %v1799
        %v1825 = vmul.f32 %v1401, %v1803
        %v1826 = vmul.f32 %v1402, %v1799
        %v1827 = vmul.f32 %v1403, %v1803
        %v1828 = vmul.f32 %v1404, %v1799
        %v1829 = vmul.f32 %v1405, %v1803
        %v1830 = vmul.f32 %v1406, %v1799
        %v1831 = vmul.f32 %v1407, %v1803
        %v1832 = vmul.f32 %v1408, %v1799
        %v1833 = vmul.f32 %v1409, %v1803
        %v1834 = vmul.f32 %v1410, %v1799
        %v1835 = vmul.f32 %v1411, %v1803
        %v1836 = vmul.f32 %v1412, %v1799
        %v1837 = vmul.f32 %v1413, %v1803
        %v1870 = vrot.slane %v1806, 2
        %v1871 = vrot.slane %v1807, 2
        %v1872 = vrot.slane %v1808, 2
        %v1873 = vsel %vm1491, %v1870, %v1872
        %v1874 = vrot.slane %v1809, 2
        %v1875 = vsel %vm1491, %v1871, %v1874
        %v1876 = vrot.slane %v1810, 2
        %v1877 = vrot.slane %v1811, 2
        %v1878 = vrot.slane %v1812, 2
        %v1879 = vsel %vm1491, %v1876, %v1878
        %v1880 = vrot.slane %v1813, 2
        %v1881 = vsel %vm1491, %v1877, %v1880
        %v1882 = vrot.slane %v1814, 2
        %v1883 = vrot.slane %v1815, 2
        %v1884 = vrot.slane %v1816, 2
        %v1885 = vsel %vm1491, %v1882, %v1884
        %v1886 = vrot.slane %v1817, 2
        %v1887 = vsel %vm1491, %v1883, %v1886
        %v1888 = vrot.slane %v1818, 2
        %v1889 = vrot.slane %v1819, 2
        %v1890 = vrot.slane %v1820, 2
        %v1891 = vsel %vm1491, %v1888, %v1890
        %v1892 = vrot.slane %v1821, 2
        %v1893 = vsel %vm1491, %v1889, %v1892
        %v1894 = vrot.slane %v1822, 2
        %v1895 = vrot.slane %v1823, 2
        %v1896 = vrot.slane %v1824, 2
        %v1897 = vsel %vm1491, %v1894, %v1896
        %v1898 = vrot.slane %v1825, 2
        %v1899 = vsel %vm1491, %v1895, %v1898
        %v1900 = vrot.slane %v1826, 2
        %v1901 = vrot.slane %v1827, 2
        %v1902 = vrot.slane %v1828, 2
        %v1903 = vsel %vm1491, %v1900, %v1902
        %v1904 = vrot.slane %v1829, 2
        %v1905 = vsel %vm1491, %v1901, %v1904
        %v1906 = vrot.slane %v1830, 2
        %v1907 = vrot.slane %v1831, 2
        %v1908 = vrot.slane %v1832, 2
        %v1909 = vsel %vm1491, %v1906, %v1908
        %v1910 = vrot.slane %v1833, 2
        %v1911 = vsel %vm1491, %v1907, %v1910
        %v1912 = vrot.slane %v1834, 2
        %v1913 = vrot.slane %v1835, 2
        %v1914 = vrot.slane %v1836, 2
        %v1915 = vsel %vm1491, %v1912, %v1914
        %v1916 = vrot.slane %v1837, 2
        %v1917 = vsel %vm1491, %v1913, %v1916
        %v1950 = vadd.f32 %v1761, %v1870
        %v1951 = vadd.f32 %v1762, %v1871
        %v1952 = vadd.f32 %v1763, %v1873
        %v1953 = vadd.f32 %v1764, %v1875
        %v1954 = vadd.f32 %v1765, %v1876
        %v1955 = vadd.f32 %v1766, %v1877
        %v1956 = vadd.f32 %v1767, %v1879
        %v1957 = vadd.f32 %v1768, %v1881
        %v1958 = vadd.f32 %v1769, %v1882
        %v1959 = vadd.f32 %v1770, %v1883
        %v1960 = vadd.f32 %v1771, %v1885
        %v1961 = vadd.f32 %v1772, %v1887
        %v1962 = vadd.f32 %v1773, %v1888
        %v1963 = vadd.f32 %v1774, %v1889
        %v1964 = vadd.f32 %v1775, %v1891
        %v1965 = vadd.f32 %v1776, %v1893
        %v1966 = vadd.f32 %v1777, %v1894
        %v1967 = vadd.f32 %v1778, %v1895
        %v1968 = vadd.f32 %v1779, %v1897
        %v1969 = vadd.f32 %v1780, %v1899
        %v1970 = vadd.f32 %v1781, %v1900
        %v1971 = vadd.f32 %v1782, %v1901
        %v1972 = vadd.f32 %v1783, %v1903
        %v1973 = vadd.f32 %v1784, %v1905
        %v1974 = vadd.f32 %v1785, %v1906
        %v1975 = vadd.f32 %v1786, %v1907
        %v1976 = vadd.f32 %v1787, %v1909
        %v1977 = vadd.f32 %v1788, %v1911
        %v1978 = vadd.f32 %v1789, %v1912
        %v1979 = vadd.f32 %v1790, %v1913
        %v1980 = vadd.f32 %v1791, %v1915
        %v1981 = vadd.f32 %v1792, %v1917
        %v1982 = vld [vmem:[%s442] sm:$0x3]
        %v1984 = vlaneseq
        %v1985 = vshrl.u32 %v1984, 7
        %v1986 = vsub.s32 0, %v1985
        %v1987 = vrot.slane %v1982, %v1986
        %v1988 = vlaneseq
        %v1989 = vshrl.u32 %v1988, 7
        %v1990 = vsub.s32 1, %v1989
        %v1991 = vrot.slane %v1982, %v1990
        %v1994 = vadd.f32 %v1950, %v1987
        %v1995 = vadd.f32 %v1951, %v1991
        %v1996 = vadd.f32 %v1952, %v1987
        %v1997 = vadd.f32 %v1953, %v1991
        %v1998 = vadd.f32 %v1954, %v1987
        %v1999 = vadd.f32 %v1955, %v1991
        %v2000 = vadd.f32 %v1956, %v1987
        %v2001 = vadd.f32 %v1957, %v1991
        %v2002 = vadd.f32 %v1958, %v1987
        %v2003 = vadd.f32 %v1959, %v1991
        %v2004 = vadd.f32 %v1960, %v1987
        %v2005 = vadd.f32 %v1961, %v1991
        %v2006 = vadd.f32 %v1962, %v1987
        %v2007 = vadd.f32 %v1963, %v1991
        %v2008 = vadd.f32 %v1964, %v1987
        %v2009 = vadd.f32 %v1965, %v1991
        %v2010 = vadd.f32 %v1966, %v1987
        %v2011 = vadd.f32 %v1967, %v1991
        %v2012 = vadd.f32 %v1968, %v1987
        %v2013 = vadd.f32 %v1969, %v1991
        %v2014 = vadd.f32 %v1970, %v1987
        %v2015 = vadd.f32 %v1971, %v1991
        %v2016 = vadd.f32 %v1972, %v1987
        %v2017 = vadd.f32 %v1973, %v1991
        %v2018 = vadd.f32 %v1974, %v1987
        %v2019 = vadd.f32 %v1975, %v1991
        %v2020 = vadd.f32 %v1976, %v1987
        %v2021 = vadd.f32 %v1977, %v1991
        %v2022 = vadd.f32 %v1978, %v1987
        %v2023 = vadd.f32 %v1979, %v1991
        %v2024 = vadd.f32 %v1980, %v1987
        %v2025 = vadd.f32 %v1981, %v1991
        %v2026 = vmul.f32 %v1994, 0.5
        %v2027 = vmul.f32 %v1995, 0.5
        %v2028 = vmul.f32 %v1996, 0.5
        %v2029 = vmul.f32 %v1997, 0.5
        %v2030 = vmul.f32 %v1998, 0.5
        %v2031 = vmul.f32 %v1999, 0.5
        %v2032 = vmul.f32 %v2000, 0.5
        %v2033 = vmul.f32 %v2001, 0.5
        %v2034 = vmul.f32 %v2002, 0.5
        %v2035 = vmul.f32 %v2003, 0.5
        %v2036 = vmul.f32 %v2004, 0.5
        %v2037 = vmul.f32 %v2005, 0.5
        %v2038 = vmul.f32 %v2006, 0.5
        %v2039 = vmul.f32 %v2007, 0.5
        %v2040 = vmul.f32 %v2008, 0.5
        %v2041 = vmul.f32 %v2009, 0.5
        %v2042 = vmul.f32 %v2010, 0.5
        %v2043 = vmul.f32 %v2011, 0.5
        %v2044 = vmul.f32 %v2012, 0.5
        %v2045 = vmul.f32 %v2013, 0.5
        %v2046 = vmul.f32 %v2014, 0.5
        %v2047 = vmul.f32 %v2015, 0.5
        %v2048 = vmul.f32 %v2016, 0.5
        %v2049 = vmul.f32 %v2017, 0.5
        %v2050 = vmul.f32 %v2018, 0.5
        %v2051 = vmul.f32 %v2019, 0.5
        %v2052 = vmul.f32 %v2020, 0.5
        %v2053 = vmul.f32 %v2021, 0.5
        %v2054 = vmul.f32 %v2022, 0.5
        %v2055 = vmul.f32 %v2023, 0.5
        %v2056 = vmul.f32 %v2024, 0.5
        %v2057 = vmul.f32 %v2025, 0.5
        %v2058 = vmul.f32 %v1994, 0.70710677
        %v2059 = vmul.f32 %v1995, 0.70710677
        %v2060 = vmul.f32 %v1996, 0.70710677
        %v2061 = vmul.f32 %v1997, 0.70710677
        %v2062 = vmul.f32 %v1998, 0.70710677
        %v2063 = vmul.f32 %v1999, 0.70710677
        %v2064 = vmul.f32 %v2000, 0.70710677
        %v2065 = vmul.f32 %v2001, 0.70710677
        %v2066 = vmul.f32 %v2002, 0.70710677
        %v2067 = vmul.f32 %v2003, 0.70710677
        %v2068 = vmul.f32 %v2004, 0.70710677
        %v2069 = vmul.f32 %v2005, 0.70710677
        %v2070 = vmul.f32 %v2006, 0.70710677
        %v2071 = vmul.f32 %v2007, 0.70710677
        %v2072 = vmul.f32 %v2008, 0.70710677
        %v2073 = vmul.f32 %v2009, 0.70710677
        %v2074 = vmul.f32 %v2010, 0.70710677
        %v2075 = vmul.f32 %v2011, 0.70710677
        %v2076 = vmul.f32 %v2012, 0.70710677
        %v2077 = vmul.f32 %v2013, 0.70710677
        %v2078 = vmul.f32 %v2014, 0.70710677
        %v2079 = vmul.f32 %v2015, 0.70710677
        %v2080 = vmul.f32 %v2016, 0.70710677
        %v2081 = vmul.f32 %v2017, 0.70710677
        %v2082 = vmul.f32 %v2018, 0.70710677
        %v2083 = vmul.f32 %v2019, 0.70710677
        %v2084 = vmul.f32 %v2020, 0.70710677
        %v2085 = vmul.f32 %v2021, 0.70710677
        %v2086 = vmul.f32 %v2022, 0.70710677
        %v2087 = vmul.f32 %v2023, 0.70710677
        %v2088 = vmul.f32 %v2024, 0.70710677
        %v2089 = vmul.f32 %v2025, 0.70710677
        %v2090 = verf.f32.pop %v2058
        %v2091 = verf.f32.pop %v2059
        %v2092 = verf.f32.pop %v2060
        %v2093 = verf.f32.pop %v2061
        %v2094 = verf.f32.pop %v2062
        %v2095 = verf.f32.pop %v2063
        %v2096 = verf.f32.pop %v2064
        %v2097 = verf.f32.pop %v2065
        %v2098 = verf.f32.pop %v2066
        %v2099 = verf.f32.pop %v2067
        %v2100 = verf.f32.pop %v2068
        %v2101 = verf.f32.pop %v2069
        %v2102 = verf.f32.pop %v2070
        %v2103 = verf.f32.pop %v2071
        %v2104 = verf.f32.pop %v2072
        %v2105 = verf.f32.pop %v2073
        %v2106 = verf.f32.pop %v2074
        %v2107 = verf.f32.pop %v2075
        %v2108 = verf.f32.pop %v2076
        %v2109 = verf.f32.pop %v2077
        %v2110 = verf.f32.pop %v2078
        %v2111 = verf.f32.pop %v2079
        %v2112 = verf.f32.pop %v2080
        %v2113 = verf.f32.pop %v2081
        %v2114 = verf.f32.pop %v2082
        %v2115 = verf.f32.pop %v2083
        %v2116 = verf.f32.pop %v2084
        %v2117 = verf.f32.pop %v2085
        %v2118 = verf.f32.pop %v2086
        %v2119 = verf.f32.pop %v2087
        %v2120 = verf.f32.pop %v2088
        %v2121 = verf.f32.pop %v2089
        %v2122 = vadd.f32 %v2090, 1.0
        %v2123 = vadd.f32 %v2091, 1.0
        %v2124 = vadd.f32 %v2092, 1.0
        %v2125 = vadd.f32 %v2093, 1.0
        %v2126 = vadd.f32 %v2094, 1.0
        %v2127 = vadd.f32 %v2095, 1.0
        %v2128 = vadd.f32 %v2096, 1.0
        %v2129 = vadd.f32 %v2097, 1.0
        %v2130 = vadd.f32 %v2098, 1.0
        %v2131 = vadd.f32 %v2099, 1.0
        %v2132 = vadd.f32 %v2100, 1.0
        %v2133 = vadd.f32 %v2101, 1.0
        %v2134 = vadd.f32 %v2102, 1.0
        %v2135 = vadd.f32 %v2103, 1.0
        %v2136 = vadd.f32 %v2104, 1.0
        %v2137 = vadd.f32 %v2105, 1.0
        %v2138 = vadd.f32 %v2106, 1.0
        %v2139 = vadd.f32 %v2107, 1.0
        %v2140 = vadd.f32 %v2108, 1.0
        %v2141 = vadd.f32 %v2109, 1.0
        %v2142 = vadd.f32 %v2110, 1.0
        %v2143 = vadd.f32 %v2111, 1.0
        %v2144 = vadd.f32 %v2112, 1.0
        %v2145 = vadd.f32 %v2113, 1.0
        %v2146 = vadd.f32 %v2114, 1.0
        %v2147 = vadd.f32 %v2115, 1.0
        %v2148 = vadd.f32 %v2116, 1.0
        %v2149 = vadd.f32 %v2117, 1.0
        %v2150 = vadd.f32 %v2118, 1.0
        %v2151 = vadd.f32 %v2119, 1.0
        %v2152 = vadd.f32 %v2120, 1.0
        %v2153 = vadd.f32 %v2121, 1.0
        %v2154 = vmul.f32 %v2026, %v2122
        %v2155 = vmul.f32 %v2027, %v2123
        %v2156 = vmul.f32 %v2028, %v2124
        %v2157 = vmul.f32 %v2029, %v2125
        %v2158 = vmul.f32 %v2030, %v2126
        %v2159 = vmul.f32 %v2031, %v2127
        %v2160 = vmul.f32 %v2032, %v2128
        %v2161 = vmul.f32 %v2033, %v2129
        %v2162 = vmul.f32 %v2034, %v2130
        %v2163 = vmul.f32 %v2035, %v2131
        %v2164 = vmul.f32 %v2036, %v2132
        %v2165 = vmul.f32 %v2037, %v2133
        %v2166 = vmul.f32 %v2038, %v2134
        %v2167 = vmul.f32 %v2039, %v2135
        %v2168 = vmul.f32 %v2040, %v2136
        %v2169 = vmul.f32 %v2041, %v2137
        %v2170 = vmul.f32 %v2042, %v2138
        %v2171 = vmul.f32 %v2043, %v2139
        %v2172 = vmul.f32 %v2044, %v2140
        %v2173 = vmul.f32 %v2045, %v2141
        %v2174 = vmul.f32 %v2046, %v2142
        %v2175 = vmul.f32 %v2047, %v2143
        %v2176 = vmul.f32 %v2048, %v2144
        %v2177 = vmul.f32 %v2049, %v2145
        %v2178 = vmul.f32 %v2050, %v2146
        %v2179 = vmul.f32 %v2051, %v2147
        %v2180 = vmul.f32 %v2052, %v2148
        %v2181 = vmul.f32 %v2053, %v2149
        %v2182 = vmul.f32 %v2054, %v2150
        %v2183 = vmul.f32 %v2055, %v2151
        %v2184 = vmul.f32 %v2056, %v2152
        %v2185 = vmul.f32 %v2057, %v2153
        %vm2218 = vcmask 1040384
        %v2219 = vrot.slane %v2154, 7
        %v2220 = vrot.slane %v2156, 7
        %v2221 = vsel %vm2218, %v2219, %v2220
        %v2222 = vrot.slane %v2155, 7
        %v2223 = vrot.slane %v2157, 7
        %v2224 = vsel %vm2218, %v2222, %v2223
        %v2225 = vrot.slane %v2158, 7
        %v2226 = vrot.slane %v2160, 7
        %v2227 = vsel %vm2218, %v2225, %v2226
        %v2228 = vrot.slane %v2159, 7
        %v2229 = vrot.slane %v2161, 7
        %v2230 = vsel %vm2218, %v2228, %v2229
        %v2231 = vrot.slane %v2162, 7
        %v2232 = vrot.slane %v2164, 7
        %v2233 = vsel %vm2218, %v2231, %v2232
        %v2234 = vrot.slane %v2163, 7
        %v2235 = vrot.slane %v2165, 7
        %v2236 = vsel %vm2218, %v2234, %v2235
        %v2237 = vrot.slane %v2166, 7
        %v2238 = vrot.slane %v2168, 7
        %v2239 = vsel %vm2218, %v2237, %v2238
        %v2240 = vrot.slane %v2167, 7
        %v2241 = vrot.slane %v2169, 7
        %v2242 = vsel %vm2218, %v2240, %v2241
        %v2243 = vrot.slane %v2170, 7
        %v2244 = vrot.slane %v2172, 7
        %v2245 = vsel %vm2218, %v2243, %v2244
        %v2246 = vrot.slane %v2171, 7
        %v2247 = vrot.slane %v2173, 7
        %v2248 = vsel %vm2218, %v2246, %v2247
        %v2249 = vrot.slane %v2174, 7
        %v2250 = vrot.slane %v2176, 7
        %v2251 = vsel %vm2218, %v2249, %v2250
        %v2252 = vrot.slane %v2175, 7
        %v2253 = vrot.slane %v2177, 7
        %v2254 = vsel %vm2218, %v2252, %v2253
        %v2255 = vrot.slane %v2178, 7
        %v2256 = vrot.slane %v2180, 7
        %v2257 = vsel %vm2218, %v2255, %v2256
        %v2258 = vrot.slane %v2179, 7
        %v2259 = vrot.slane %v2181, 7
        %v2260 = vsel %vm2218, %v2258, %v2259
        %v2261 = vrot.slane %v2182, 7
        %v2262 = vrot.slane %v2184, 7
        %v2263 = vsel %vm2218, %v2261, %v2262
        %v2264 = vrot.slane %v2183, 7
        %v2265 = vrot.slane %v2185, 7
        %v2266 = vsel %vm2218, %v2264, %v2265
        %v2283 = vld [vmem:[%s451] sm:$0xff]
        %v2284 = vld [vmem:[%s451 + $0x8] sm:$0xff]
        %v2285 = vld [vmem:[%s451 + $0x10] sm:$0xff]
        %v2286 = vld [vmem:[%s451 + $0x18] sm:$0xff]
        %v2287 = vld [vmem:[%s451 + $0x20] sm:$0xff]
        %v2288 = vld [vmem:[%s451 + $0x28] sm:$0xff]
        %v2289 = vld [vmem:[%s451 + $0x30] sm:$0xff]
        %v2290 = vld [vmem:[%s451 + $0x38] sm:$0xff]
        %v2291 = vld [vmem:[%s451 + $0x40] sm:$0xff]
        %v2292 = vld [vmem:[%s451 + $0x48] sm:$0xff]
        %v2293 = vld [vmem:[%s451 + $0x50] sm:$0xff]
        %v2294 = vld [vmem:[%s451 + $0x58] sm:$0xff]
        %v2295 = vld [vmem:[%s451 + $0x60] sm:$0xff]
        %v2296 = vld [vmem:[%s451 + $0x68] sm:$0xff]
        %v2297 = vld [vmem:[%s451 + $0x70] sm:$0xff]
        %v2298 = vld [vmem:[%s451 + $0x78] sm:$0xff]
        %v2299 = vld [vmem:[%s451 + $0x80] sm:$0xff]
        %v2300 = vld [vmem:[%s451 + $0x88] sm:$0xff]
        %v2301 = vld [vmem:[%s451 + $0x90] sm:$0xff]
        %v2302 = vld [vmem:[%s451 + $0x98] sm:$0xff]
        %v2303 = vld [vmem:[%s451 + $0xa0] sm:$0xff]
        %v2304 = vld [vmem:[%s451 + $0xa8] sm:$0xff]
        %v2305 = vld [vmem:[%s451 + $0xb0] sm:$0xff]
        %v2306 = vld [vmem:[%s451 + $0xb8] sm:$0xff]
        %v2307 = vld [vmem:[%s451 + $0xc0] sm:$0xff]
        %v2308 = vld [vmem:[%s451 + $0xc8] sm:$0xff]
        %v2309 = vld [vmem:[%s451 + $0xd0] sm:$0xff]
        %v2310 = vld [vmem:[%s451 + $0xd8] sm:$0xff]
        %v2311 = vld [vmem:[%s451 + $0xe0] sm:$0xff]
        %v2312 = vld [vmem:[%s451 + $0xe8] sm:$0xff]
        %v2313 = vld [vmem:[%s451 + $0xf0] sm:$0xff]
        %v2314 = vld [vmem:[%s451 + $0xf8] sm:$0xff]
        %v2315 = vpack.c.bf16 %v2227, %v2221
        %v2316 = vpack.c.bf16 %v2230, %v2224
        %v2317 = vpack.c.bf16 %v2239, %v2233
        %v2318 = vpack.c.bf16 %v2242, %v2236
        %v2319 = vpack.c.bf16 %v2251, %v2245
        %v2320 = vpack.c.bf16 %v2254, %v2248
        %v2321 = vpack.c.bf16 %v2263, %v2257
        %v2322 = vpack.c.bf16 %v2266, %v2260
        %v2323 = vpack.c.bf16 %v2284, %v2283
        %v2324 = vpack.c.bf16 %v2286, %v2285
        %v2325 = vpack.c.bf16 %v2288, %v2287
        %v2326 = vpack.c.bf16 %v2290, %v2289
        %v2327 = vpack.c.bf16 %v2292, %v2291
        %v2328 = vpack.c.bf16 %v2294, %v2293
        %v2329 = vpack.c.bf16 %v2296, %v2295
        %v2330 = vpack.c.bf16 %v2298, %v2297
        %v2331 = vpack.c.bf16 %v2300, %v2299
        %v2332 = vpack.c.bf16 %v2302, %v2301
        %v2333 = vpack.c.bf16 %v2304, %v2303
        %v2334 = vpack.c.bf16 %v2306, %v2305
        %v2335 = vpack.c.bf16 %v2308, %v2307
        %v2336 = vpack.c.bf16 %v2310, %v2309
        %v2337 = vpack.c.bf16 %v2312, %v2311
        %v2338 = vpack.c.bf16 %v2314, %v2313
        %v2339 = vld [vmem:[#allocation3] sm:$0xff]
        %v2340 = vld [vmem:[#allocation3 + $0x8] sm:$0xff]
        %v2341 = vld [vmem:[#allocation3 + $0x10] sm:$0xff]
        %v2342 = vld [vmem:[#allocation3 + $0x18] sm:$0xff]
        %v2343 = vld [vmem:[#allocation3 + $0x20] sm:$0xff]
        %v2344 = vld [vmem:[#allocation3 + $0x28] sm:$0xff]
        %v2345 = vld [vmem:[#allocation3 + $0x30] sm:$0xff]
        %v2346 = vld [vmem:[#allocation3 + $0x38] sm:$0xff]
        %2347 = vmatprep.subr.bf16.mxu0 0
        %2348 = vmatpush1.bf16.msra.mxu0 %v2323
        %2349 = vmatprep.subr.bf16.mxu0 0
        %2350 = vmatpush1.bf16.msra.mxu0 %v2324
        %2351 = vmatprep.subr.bf16.mxu0 0
        %2352 = vmatpush1.bf16.msra.mxu0 %v2325
        %2353 = vmatprep.subr.bf16.mxu0 0
        %2354 = vmatpush1.bf16.msra.mxu0 %v2326
        %2355 = vmatprep.subr.bf16.mxu0 0
        %2356 = vmatpush1.bf16.msra.mxu0 %v2327
        %2357 = vmatprep.subr.bf16.mxu0 0
        %2358 = vmatpush1.bf16.msra.mxu0 %v2328
        %2359 = vmatprep.subr.bf16.mxu0 0
        %2360 = vmatpush1.bf16.msra.mxu0 %v2329
        %2361 = vmatprep.subr.bf16.mxu0 0
        %2362 = vmatpush1.bf16.msra.mxu0 %v2330
        %2363 = vmatprep.subr.bf16.mxu0 0
        %2364 = vmatpush1.bf16.msra.mxu0 %v2331
        %2365 = vmatprep.subr.bf16.mxu0 0
        %2366 = vmatpush1.bf16.msra.mxu0 %v2332
        %2367 = vmatprep.subr.bf16.mxu0 0
        %2368 = vmatpush1.bf16.msra.mxu0 %v2333
        %2369 = vmatprep.subr.bf16.mxu0 0
        %2370 = vmatpush1.bf16.msra.mxu0 %v2334
        %2371 = vmatprep.subr.bf16.mxu0 0
        %2372 = vmatpush1.bf16.msra.mxu0 %v2335
        %2373 = vmatprep.subr.bf16.mxu0 0
        %2374 = vmatpush1.bf16.msra.mxu0 %v2336
        %2375 = vmatprep.subr.bf16.mxu0 0
        %2376 = vmatpush1.bf16.msra.mxu0 %v2337
        %2377 = vmatprep.subr.bf16.mxu0 0
        %2378 = vmatpush1.bf16.msra.mxu0 %v2338
        %2379 = vmatprep.mubr.bf16.mxu0 %v2316
        %2380 = vmatmul.mubr.bf16.gmra.mrb[0].mxu0 %v2315
        %v2381 = vpop.f32.mrb[0].mxu0
        %v2382 = vadd.f32 0.0, %v2381
        %v2383 = vpop.f32.mrb[0].mxu0
        %v2384 = vpop.f32.mrb[0].mxu0
        %v2385 = vadd.f32 0.0, %v2384
        %v2386 = vpop.f32.mrb[0].mxu0
        %2387 = vmatprep.mubr.bf16.mxu0 %v2318
        %2388 = vmatmul.mubr.bf16.gmra.mrb[0].mxu0 %v2317
        %v2389 = vpop.f32.mrb[0].mxu0
        %v2390 = vadd.f32 0.0, %v2389
        %v2391 = vpop.f32.mrb[0].mxu0
        %v2392 = vpop.f32.mrb[0].mxu0
        %v2393 = vadd.f32 0.0, %v2392
        %v2394 = vpop.f32.mrb[0].mxu0
        %2395 = vmatprep.mubr.bf16.mxu0 %v2320
        %2396 = vmatmul.mubr.bf16.gmra.mrb[0].mxu0 %v2319
        %v2397 = vpop.f32.mrb[0].mxu0
        %v2398 = vadd.f32 0.0, %v2397
        %v2399 = vpop.f32.mrb[0].mxu0
        %v2400 = vpop.f32.mrb[0].mxu0
        %v2401 = vadd.f32 0.0, %v2400
        %v2402 = vpop.f32.mrb[0].mxu0
        %2403 = vmatprep.mubr.bf16.mxu0 %v2322
        %2404 = vmatmul.mubr.bf16.gmra.mrb[0].mxu0 %v2321
        %v2405 = vpop.f32.mrb[0].mxu0
        %v2406 = vadd.f32 0.0, %v2405
        %v2407 = vpop.f32.mrb[0].mxu0
        %v2408 = vpop.f32.mrb[0].mxu0
        %v2409 = vadd.f32 0.0, %v2408
        %v2410 = vpop.f32.mrb[0].mxu0
        %2411 = vdwg.mxu0
        %v2412 = vadd.f32 %v2339, %v2382
        %v2413 = vadd.f32 %v2340, %v2385
        %v2414 = vadd.f32 %v2341, %v2390
        %v2415 = vadd.f32 %v2342, %v2393
        %v2416 = vadd.f32 %v2343, %v2398
        %v2417 = vadd.f32 %v2344, %v2401
        %v2418 = vadd.f32 %v2345, %v2406
        %v2419 = vadd.f32 %v2346, %v2409
        %2420 = vst.msk [vmem:[#allocation3] sm:$0xff] %vm638, %v2412
        %2421 = vst.msk [vmem:[#allocation3 + $0x8] sm:$0xff] %vm638, %v2413
        %2422 = vst.msk [vmem:[#allocation3 + $0x10] sm:$0xff] %vm638, %v2414
        %2423 = vst.msk [vmem:[#allocation3 + $0x18] sm:$0xff] %vm638, %v2415
        %2424 = vst.msk [vmem:[#allocation3 + $0x20] sm:$0xff] %vm638, %v2416
        %2425 = vst.msk [vmem:[#allocation3 + $0x28] sm:$0xff] %vm638, %v2417
        %2426 = vst.msk [vmem:[#allocation3 + $0x30] sm:$0xff] %vm638, %v2418
        %2427 = vst.msk [vmem:[#allocation3 + $0x38] sm:$0xff] %vm638, %v2419
        %p2428 = scmp.eq.s32.totalorder %s38, 1
        // Predicated region
        $region81: #{tpu_custom_call.1} parent=47 // pred_check
          %p2429 = pneg %p2428
        $region82: #{tpu_custom_call.1} parent=47 // pred_check_branch
          %2431 = sbr.rel (%p2429) target = $region84
        $region83: #{tpu_custom_call.1} parent=47 // pred_region
          %v2432 = vld [vmem:[#allocation3] sm:$0xff]
          %v2433 = vld [vmem:[#allocation3 + $0x8] sm:$0xff]
          %v2434 = vld [vmem:[#allocation3 + $0x10] sm:$0xff]
          %v2435 = vld [vmem:[#allocation3 + $0x18] sm:$0xff]
          %v2436 = vld [vmem:[#allocation3 + $0x20] sm:$0xff]
          %v2437 = vld [vmem:[#allocation3 + $0x28] sm:$0xff]
          %v2438 = vld [vmem:[#allocation3 + $0x30] sm:$0xff]
          %v2439 = vld [vmem:[#allocation3 + $0x38] sm:$0xff]
          %v2440 = vld [vmem:[#allocation15] sm:$0x1]
          %v2442 = vlaneseq
          %v2443 = vshrl.u32 %v2442, 7
          %v2444 = vsub.s32 0, %v2443
          %v2445 = vrot.slane %v2440, %v2444
          %v2447 = vadd.f32 %v2432, %v2445
          %v2448 = vadd.f32 %v2433, %v2445
          %v2449 = vadd.f32 %v2434, %v2445
          %v2450 = vadd.f32 %v2435, %v2445
          %v2451 = vadd.f32 %v2436, %v2445
          %v2452 = vadd.f32 %v2437, %v2445
          %v2453 = vadd.f32 %v2438, %v2445
          %v2454 = vadd.f32 %v2439, %v2445
          %2455 = vst.msk [vmem:[%s510] sm:$0xff] %vm638, %v2447
          %2456 = vst.msk [vmem:[%s510 + $0x8] sm:$0xff] %vm638, %v2448
          %2457 = vst.msk [vmem:[%s510 + $0x10] sm:$0xff] %vm638, %v2449
          %2458 = vst.msk [vmem:[%s510 + $0x18] sm:$0xff] %vm638, %v2450
          %2459 = vst.msk [vmem:[%s510 + $0x20] sm:$0xff] %vm638, %v2451
          %2460 = vst.msk [vmem:[%s510 + $0x28] sm:$0xff] %vm638, %v2452
          %2461 = vst.msk [vmem:[%s510 + $0x30] sm:$0xff] %vm638, %v2453
          %2462 = vst.msk [vmem:[%s510 + $0x38] sm:$0xff] %vm638, %v2454
        $region84: #{tpu_custom_call.1} parent=47 // pred_fallthru
          _
        %s2463 = sand.u32 %s230, 1
        %s2464 = scalar_lea.sflag [#allocation6], %s2463
        %s2465 = sand.u32 %s230, 1
        %s2466 = smul.addr %s2465, 64
        %s2467 = scalar_lea.vmem [#allocation16], %s2466
        // Predicated region
        $region85: #{tpu_custom_call.1} parent=47 // pred_check
          %p2468 = pneg %p240
        $region86: #{tpu_custom_call.1} parent=47 // pred_check_branch
          %2470 = sbr.rel (%p2468) target = $region88
        $region87: #{tpu_custom_call.1} parent=47 // pred_region
          %s2472 = ssub.s32 1024, 1024
          %2473 = vsyncadd %s2464, %s2472
          %s2474 = smul.addr %s37, 8
          %s2475 = smul.addr %s2474, 128
          %s2476 = scalar_lea.hbm %s7, %s2475
          %s2477 = sshll.u32 %s2467, 4
          %s2478 = int_to_ptr.vmem [resolvable:$true] %s2477
          %2483 = dma.vmem_to_hbm [thread:$0]  %s2478, 1024, %s2476, %s2464, 128, 128, 8
        $region88: #{tpu_custom_call.1} parent=47 // pred_fallthru
          _
      $region48: #{tpu_custom_call.1} parent=5 // pred_fallthru
        _
      %p2484 = scmp.le.s32.totalorder 2, %s28
      // Predicated region
      $region89: #{tpu_custom_call.1} parent=5 // pred_check
        %p2485 = pneg %p2484
      $region90: #{tpu_custom_call.1} parent=5 // pred_check_branch
        %2487 = sbr.rel (%p2485) target = $region92
      $region91: #{tpu_custom_call.1} parent=5 // pred_region
        %s2488 = ssub.s32 %s28, 2
        // Predicated region
        $region93: #{tpu_custom_call.1} parent=91 // pred_check
          %p2489 = pneg %p246
        $region94: #{tpu_custom_call.1} parent=91 // pred_check_branch
          %2491 = sbr.rel (%p2489) target = $region96
        $region95: #{tpu_custom_call.1} parent=91 // pred_region
          %s2492 = sand.u32 %s231, 1
          %s2493 = scalar_lea.sflag [#allocation6], %s2492
          %s2494 = sand.u32 %s231, 1
          %s2495 = smul.addr %s2494, 64
          %s2496 = scalar_lea.vmem [#allocation16], %s2495
          %2497 = dma.done %s2493, 1024
        $region96: #{tpu_custom_call.1} parent=91 // pred_fallthru
          _
      $region92: #{tpu_custom_call.1} parent=5 // pred_fallthru
        _
    $region6: #{tpu_custom_call.1} parent=1 // loop_footer
      %s32 = sadd.s32 1, %s28
    $region7: #{tpu_custom_call.1} parent=1 // loop_footer_branch
      %27 = sbr.rel target = $region3
    $region8: #{tpu_custom_call.1} parent=1 // loop_exit
      _
    %2498 = vsyncpa [#allocation5], 1
    %s2499 = scalar_lea.sflag [#allocation5], 1
    %2500 = vsyncpa %s2499, 1
    %2501 = vsyncpa [#allocation8], 1
    %s2502 = scalar_lea.sflag [#allocation8], 1
    %2503 = vsyncpa %s2502, 1
    %2504 = vsyncpa [#allocation11], 1
    %s2505 = scalar_lea.sflag [#allocation11], 1
    %2506 = vsyncpa %s2505, 1
    %2507 = vsyncpa [#allocation14], 1
    %s2508 = scalar_lea.sflag [#allocation14], 1
    %2509 = vsyncpa %s2508, 1
    %2510 = vsyncpa [#allocation6], 1
    %s2511 = scalar_lea.sflag [#allocation6], 1
    %2512 = vsyncpa %s2511, 1

</llo_original>
